<compile_context>
chip_gen: v5e
topology: v5e:2x2
jax: 0.10.0
libtpu: 0.0.40
codegen_flags: <defaults>
</compile_context>

<pallas_src>
import jax
import jax.numpy as jnp
from jax.experimental import pallas as pl
from jax.experimental.pallas import tpu as pltpu

# Small analogues of the module's architecture constants
# (real efficientnet-b0: C_FEAT = 1280, DENSE = [1024, 1024, 512, 512]).
C_FEAT = 128               # FEATURE_DIMS[backbone]
N_GENDER = 32              # n_gender_dcs
DENSE = [64, 64, 32, 32]   # dense_layers


def _swish(x):
    # EfficientNet.MemoryEfficientSwish: x * sigmoid(x)
    return x * jax.nn.sigmoid(x)


def head_kernel(feat_ref, male_ref,
                wg_ref, bg_ref,
                w0f_ref, w0g_ref, b0_ref,
                w1_ref, b1_ref,
                w2_ref, b2_ref,
                w3_ref, b3_ref,
                wd_ref, bd_ref,
                out_ref):
    # feat_ref: [TB, C, H*W] in the backbone's native NCHW order (no wrapper
    # transpose / cast pass over the big feature map).
    hw = feat_ref.shape[-1]

    # torch.mean(x, dim=(2, 3)): spatial pool as a lane reduce, f32 accumulate
    # (no materialized full-tile upcast if the input is ever bf16).
    pooled = jnp.sum(feat_ref[...], axis=-1, dtype=jnp.float32) * (1.0 / hw)

    # dropout is identity at inference; act = swish
    x = _swish(pooled)                                                # [TB, C]

    # male branch: Linear(1, N_GENDER) is a K=1 contraction == a single VPU
    # broadcast-multiply (no MXU push/pop on the head of the dependency chain).
    male = male_ref[...].astype(jnp.float32)                          # [TB, 1]
    g = _swish(male * wg_ref[...].astype(jnp.float32)
               + bg_ref[...].astype(jnp.float32))                     # [TB, NG]

    # torch.cat([x, male], dim=-1) @ W0 as the equivalent split matmul,
    # bf16 inputs, f32 accumulation on the MXU.
    h = (jnp.dot(x.astype(jnp.bfloat16), w0f_ref[...],
                 preferred_element_type=jnp.float32)
         + jnp.dot(g.astype(jnp.bfloat16), w0g_ref[...],
                   preferred_element_type=jnp.float32)
         + b0_ref[...].astype(jnp.float32))
    h = _swish(h)

    for w_ref, b_ref in ((w1_ref, b1_ref), (w2_ref, b2_ref), (w3_ref, b3_ref)):
        h = jnp.dot(h.astype(jnp.bfloat16), w_ref[...],
                    preferred_element_type=jnp.float32) + b_ref[...].astype(jnp.float32)
        h = _swish(h)

    # fc_disorder: N=1 output -> VPU multiply + lane reduction instead of a
    # wasted N=1 MXU pass.  The (tb, 1) writeback is a few bytes total, so the
    # narrow store is negligible here.
    wd = wd_ref[...].astype(jnp.float32)                              # [1, D_last]
    out = jnp.sum(h * wd, axis=-1, keepdims=True) + bd_ref[...].astype(jnp.float32)
    out_ref[...] = out.astype(out_ref.dtype)


def _pick_batch_tile(B, row_vmem_bytes, budget_bytes=16 << 20):
    """Batch tile that (a) divides B, (b) is a multiple of 8 (or == B),
    (c) keeps one feat buffer under `budget_bytes` of lane-padded VMEM, and
    (d) gives >= 2 grid steps for moderate/large batches (dual-TC on v7x)."""
    cap = min(256, max(8, (budget_bytes // max(row_vmem_bytes, 1)) // 8 * 8))
    if B <= 16 or B % 8 != 0:
        # Tiny batches run as one grid step; ragged batches also fall back to
        # one step (pad B to a multiple of 8 upstream if that matters at
        # real dims / large B).
        return B
    limit = min(cap, max(8, B // 2))
    tb = 8
    for cand in range(8, limit + 1, 8):
        if B % cand == 0:
            tb = cand
    return tb


def efficient_model_head(feat_nchw, male, params):
    B, C, H, W = feat_nchw.shape
    assert C == C_FEAT
    hw = H * W

    # Free reshape (contiguous): NCHW -> [B, C, H*W].  No transpose, no cast —
    # the kernel reads the feature map exactly once from HBM.
    feat = feat_nchw.reshape(B, C, hw)
    male = male.astype(jnp.float32)

    # VMEM footprint of one batch row of the feat block (lane dim pads to 128,
    # sublane dim pads to 8).
    itemsize = jnp.dtype(feat.dtype).itemsize
    row_vmem = (-(-C // 8) * 8) * (-(-hw // 128) * 128) * itemsize
    tb = _pick_batch_tile(B, row_vmem)
    grid = (B // tb,)

    args = (feat, male,
            params["wg"], params["bg"],
            params["w0f"], params["w0g"], params["b0"],
            params["w1"], params["b1"],
            params["w2"], params["b2"],
            params["w3"], params["b3"],
            params["wd"], params["bd"])

    def const_spec(arr):
        # Weights/biases: full-array block, constant index_map -> resident
        # across batch tiles (no re-DMA when the block index repeats).
        return pl.BlockSpec(arr.shape, lambda i, _n=arr.ndim: (0,) * _n)

    in_specs = [
        pl.BlockSpec((tb, C, hw), lambda i: (i, 0, 0)),   # feat (batch-tiled)
        pl.BlockSpec((tb, 1), lambda i: (i, 0)),          # male (batch-tiled)
    ] + [const_spec(a) for a in args[2:]]

    # Scoped-VMEM limit derived from the actual tiles: 2 feat buffers
    # (double-buffered) + 2x weights + slack.  Stays inside v7x's 64 MiB.
    weight_bytes = sum(int(a.size) * jnp.dtype(a.dtype).itemsize for a in args[2:])
    vmem_limit = 2 * tb * row_vmem + 2 * weight_bytes + (4 << 20)
    vmem_limit = int(min(max(vmem_limit, 16 << 20), 100 << 20))

    return pl.pallas_call(
        head_kernel,
        out_shape=jax.ShapeDtypeStruct((B, 1), jnp.float32),
        grid_spec=pltpu.PrefetchScalarGridSpec(
            num_scalar_prefetch=0,
            grid=grid,
            in_specs=in_specs,
            out_specs=pl.BlockSpec((tb, 1), lambda i: (i, 0)),
        ),
        compiler_params=pltpu.CompilerParams(
            dimension_semantics=("parallel",),
            vmem_limit_bytes=vmem_limit,
        ),
    )(*args)


def init_params(key):
    """Deterministic nn.Linear-style init (uniform +/- 1/sqrt(fan_in)), bf16."""
    dims = [C_FEAT + N_GENDER] + DENSE
    keys = jax.random.split(key, 12)

    def lin(kw, kb, fan_in, fan_out):
        s = 1.0 / float(fan_in) ** 0.5
        w = jax.random.uniform(kw, (fan_in, fan_out), jnp.float32, -s, s)
        b = jax.random.uniform(kb, (1, fan_out), jnp.float32, -s, s)
        return w.astype(jnp.bfloat16), b.astype(jnp.bfloat16)

    p = {}
    p["wg"], p["bg"] = lin(keys[0], keys[1], 1, N_GENDER)
    w0, p["b0"] = lin(keys[2], keys[3], dims[0], dims[1])
    p["w0f"], p["w0g"] = w0[:C_FEAT], w0[C_FEAT:]
    p["w1"], p["b1"] = lin(keys[4], keys[5], dims[1], dims[2])
    p["w2"], p["b2"] = lin(keys[6], keys[7], dims[2], dims[3])
    p["w3"], p["b3"] = lin(keys[8], keys[9], dims[3], dims[4])
    # fc_disorder weight kept as a row vector [1, D_last] for the VPU
    # multiply + lane-reduce path.
    wd, p["bd"] = lin(keys[10], keys[11], dims[4], 1)
    p["wd"] = wd.reshape(1, dims[4])
    return p


def reference(feat_nchw, male, params):
    """Plain-JAX mirror of the PyTorch forward (from extract_features output),
    evaluated at the same precision as the kernel (f32 pool, bf16 weights /
    matmul inputs, f32 accumulation)."""
    x = jnp.mean(feat_nchw.astype(jnp.float32), axis=(2, 3))         # [B, C]
    x = _swish(x)                                                    # dropout = id
    male = male.astype(jnp.float32)
    g = _swish(male @ params["wg"].astype(jnp.float32)
               + params["bg"].astype(jnp.float32))
    xg = jnp.concatenate([x, g], axis=-1).astype(jnp.bfloat16)
    w0 = jnp.concatenate([params["w0f"], params["w0g"]], axis=0)
    h = _swish(jnp.dot(xg, w0, preferred_element_type=jnp.float32)
               + params["b0"].astype(jnp.float32))
    for wk, bk in (("w1", "b1"), ("w2", "b2"), ("w3", "b3")):
        h = _swish(jnp.dot(h.astype(jnp.bfloat16), params[wk],
                           preferred_element_type=jnp.float32)
                   + params[bk].astype(jnp.float32))
    return h @ params["wd"].astype(jnp.float32).T + params["bd"].astype(jnp.float32)


if __name__ == "__main__":
    key = jax.random.PRNGKey(0)
    k_feat, k_male, k_param = jax.random.split(key, 3)

    B, H, W = 2, 8, 8
    feat = jax.random.normal(k_feat, (B, C_FEAT, H, W), jnp.float32)   # backbone features (NCHW)
    male = (jax.random.uniform(k_male, (B, 1)) > 0.5).astype(jnp.float32)

    params = init_params(k_param)

    out = efficient_model_head(feat, male, params)
    out = jax.block_until_ready(out)

    ref = reference(feat, male, params)
    assert out.shape == (B, 1)
    assert jnp.allclose(out, ref, atol=1e-3, rtol=1e-3), (out, ref)
    print("KERNEL_OK")
</pallas_src>

<mosaic_0001>
module attributes {stable_mosaic.version = 11 : i64} {
  func.func @head_kernel(%arg0: i32, %arg1: memref<2x128x64xf32, #tpu.memory_space<vmem>>, %arg2: memref<2x1xf32, #tpu.memory_space<vmem>>, %arg3: memref<1x32xbf16, #tpu.memory_space<vmem>>, %arg4: memref<1x32xbf16, #tpu.memory_space<vmem>>, %arg5: memref<128x64xbf16, #tpu.memory_space<vmem>>, %arg6: memref<32x64xbf16, #tpu.memory_space<vmem>>, %arg7: memref<1x64xbf16, #tpu.memory_space<vmem>>, %arg8: memref<64x64xbf16, #tpu.memory_space<vmem>>, %arg9: memref<1x64xbf16, #tpu.memory_space<vmem>>, %arg10: memref<64x32xbf16, #tpu.memory_space<vmem>>, %arg11: memref<1x32xbf16, #tpu.memory_space<vmem>>, %arg12: memref<32x32xbf16, #tpu.memory_space<vmem>>, %arg13: memref<1x32xbf16, #tpu.memory_space<vmem>>, %arg14: memref<1x32xbf16, #tpu.memory_space<vmem>>, %arg15: memref<1x1xbf16, #tpu.memory_space<vmem>>, %arg16: memref<2x1xf32, #tpu.memory_space<vmem>>) attributes {dimension_semantics = [#tpu.dimension_semantics<parallel>], iteration_bounds = array<i64: 1>, scalar_prefetch = 0 : i64, scratch_operands = 0 : i64, tpu.core_type = #tpu.core_type<tc>, window_params = [{transform_indices = @transform_0, window_bounds = array<i64: 2, 128, 64>}, {transform_indices = @transform_1, window_bounds = array<i64: 2, 1>}, {pipeline_mode = #tpu.pipeline_mode<synchronous>, transform_indices = @transform_2, window_bounds = array<i64: 1, 32>}, {pipeline_mode = #tpu.pipeline_mode<synchronous>, transform_indices = @transform_3, window_bounds = array<i64: 1, 32>}, {pipeline_mode = #tpu.pipeline_mode<synchronous>, transform_indices = @transform_4, window_bounds = array<i64: 128, 64>}, {pipeline_mode = #tpu.pipeline_mode<synchronous>, transform_indices = @transform_5, window_bounds = array<i64: 32, 64>}, {pipeline_mode = #tpu.pipeline_mode<synchronous>, transform_indices = @transform_6, window_bounds = array<i64: 1, 64>}, {pipeline_mode = #tpu.pipeline_mode<synchronous>, transform_indices = @transform_7, window_bounds = array<i64: 64, 64>}, {pipeline_mode = #tpu.pipeline_mode<synchronous>, transform_indices = @transform_8, window_bounds = array<i64: 1, 64>}, {pipeline_mode = #tpu.pipeline_mode<synchronous>, transform_indices = @transform_9, window_bounds = array<i64: 64, 32>}, {pipeline_mode = #tpu.pipeline_mode<synchronous>, transform_indices = @transform_10, window_bounds = array<i64: 1, 32>}, {pipeline_mode = #tpu.pipeline_mode<synchronous>, transform_indices = @transform_11, window_bounds = array<i64: 32, 32>}, {pipeline_mode = #tpu.pipeline_mode<synchronous>, transform_indices = @transform_12, window_bounds = array<i64: 1, 32>}, {pipeline_mode = #tpu.pipeline_mode<synchronous>, transform_indices = @transform_13, window_bounds = array<i64: 1, 32>}, {pipeline_mode = #tpu.pipeline_mode<synchronous>, transform_indices = @transform_14, window_bounds = array<i64: 1, 1>}, {transform_indices = @transform_15, window_bounds = array<i64: 2, 1>}]} {
    %c0 = arith.constant 0 : index
    %c0_0 = arith.constant 0 : index
    %c0_1 = arith.constant 0 : index
    %0 = vector.load %arg1[%c0, %c0_0, %c0_1] : memref<2x128x64xf32, #tpu.memory_space<vmem>>, vector<2x128x64xf32>
    %cst = arith.constant dense<0.000000e+00> : vector<2x128xf32>
    %1 = vector.multi_reduction <add>, %0, %cst [2] : vector<2x128x64xf32> to vector<2x128xf32>
    %cst_2 = arith.constant 1.562500e-02 : f32
    %2 = vector.broadcast %cst_2 : f32 to vector<2x128xf32>
    %3 = arith.mulf %1, %2 : vector<2x128xf32>
    %4 = arith.negf %3 : vector<2x128xf32>
    %5 = math.exp %4 : vector<2x128xf32>
    %cst_3 = arith.constant 1.000000e+00 : f32
    %6 = vector.broadcast %cst_3 : f32 to vector<2x128xf32>
    %7 = arith.addf %6, %5 : vector<2x128xf32>
    %8 = arith.divf %6, %7 : vector<2x128xf32>
    %9 = arith.mulf %3, %8 : vector<2x128xf32>
    %c0_4 = arith.constant 0 : index
    %c0_5 = arith.constant 0 : index
    %10 = vector.load %arg2[%c0_4, %c0_5] : memref<2x1xf32, #tpu.memory_space<vmem>>, vector<2x1xf32>
    %c0_6 = arith.constant 0 : index
    %c0_7 = arith.constant 0 : index
    %11 = vector.load %arg3[%c0_6, %c0_7] : memref<1x32xbf16, #tpu.memory_space<vmem>>, vector<1x32xbf16>
    %12 = arith.extf %11 : vector<1x32xbf16> to vector<1x32xf32>
    %13 = vector.broadcast %10 : vector<2x1xf32> to vector<2x32xf32>
    %14 = vector.broadcast %12 : vector<1x32xf32> to vector<2x32xf32>
    %15 = arith.mulf %13, %14 : vector<2x32xf32>
    %c0_8 = arith.constant 0 : index
    %c0_9 = arith.constant 0 : index
    %16 = vector.load %arg4[%c0_8, %c0_9] : memref<1x32xbf16, #tpu.memory_space<vmem>>, vector<1x32xbf16>
    %17 = arith.extf %16 : vector<1x32xbf16> to vector<1x32xf32>
    %18 = vector.broadcast %17 : vector<1x32xf32> to vector<2x32xf32>
    %19 = arith.addf %15, %18 : vector<2x32xf32>
    %20 = arith.negf %19 : vector<2x32xf32>
    %21 = math.exp %20 : vector<2x32xf32>
    %cst_10 = arith.constant 1.000000e+00 : f32
    %22 = vector.broadcast %cst_10 : f32 to vector<2x32xf32>
    %23 = arith.addf %22, %21 : vector<2x32xf32>
    %24 = arith.divf %22, %23 : vector<2x32xf32>
    %25 = arith.mulf %19, %24 : vector<2x32xf32>
    %26 = arith.truncf %9 : vector<2x128xf32> to vector<2x128xbf16>
    %c0_11 = arith.constant 0 : index
    %c0_12 = arith.constant 0 : index
    %27 = vector.load %arg5[%c0_11, %c0_12] : memref<128x64xbf16, #tpu.memory_space<vmem>>, vector<128x64xbf16>
    %cst_13 = arith.constant dense<0.000000e+00> : vector<2x64xf32>
    %28 = tpu.matmul %26, %27, %cst_13 {dimension_numbers = #tpu.dot_dimension_numbers<[1], [0], [0], [1], [0, 0, 1, 1], [], []>} : vector<2x128xbf16>, vector<128x64xbf16>, vector<2x64xf32> -> vector<2x64xf32>
    %29 = arith.truncf %25 : vector<2x32xf32> to vector<2x32xbf16>
    %c0_14 = arith.constant 0 : index
    %c0_15 = arith.constant 0 : index
    %30 = vector.load %arg6[%c0_14, %c0_15] : memref<32x64xbf16, #tpu.memory_space<vmem>>, vector<32x64xbf16>
    %cst_16 = arith.constant dense<0.000000e+00> : vector<2x64xf32>
    %31 = tpu.matmul %29, %30, %cst_16 {dimension_numbers = #tpu.dot_dimension_numbers<[1], [0], [0], [1], [0, 0, 1, 1], [], []>} : vector<2x32xbf16>, vector<32x64xbf16>, vector<2x64xf32> -> vector<2x64xf32>
    %32 = arith.addf %28, %31 : vector<2x64xf32>
    %c0_17 = arith.constant 0 : index
    %c0_18 = arith.constant 0 : index
    %33 = vector.load %arg7[%c0_17, %c0_18] : memref<1x64xbf16, #tpu.memory_space<vmem>>, vector<1x64xbf16>
    %34 = arith.extf %33 : vector<1x64xbf16> to vector<1x64xf32>
    %35 = vector.broadcast %34 : vector<1x64xf32> to vector<2x64xf32>
    %36 = arith.addf %32, %35 : vector<2x64xf32>
    %37 = arith.negf %36 : vector<2x64xf32>
    %38 = math.exp %37 : vector<2x64xf32>
    %cst_19 = arith.constant 1.000000e+00 : f32
    %39 = vector.broadcast %cst_19 : f32 to vector<2x64xf32>
    %40 = arith.addf %39, %38 : vector<2x64xf32>
    %41 = arith.divf %39, %40 : vector<2x64xf32>
    %42 = arith.mulf %36, %41 : vector<2x64xf32>
    %43 = arith.truncf %42 : vector<2x64xf32> to vector<2x64xbf16>
    %c0_20 = arith.constant 0 : index
    %c0_21 = arith.constant 0 : index
    %44 = vector.load %arg8[%c0_20, %c0_21] : memref<64x64xbf16, #tpu.memory_space<vmem>>, vector<64x64xbf16>
    %cst_22 = arith.constant dense<0.000000e+00> : vector<2x64xf32>
    %45 = tpu.matmul %43, %44, %cst_22 {dimension_numbers = #tpu.dot_dimension_numbers<[1], [0], [0], [1], [0, 0, 1, 1], [], []>} : vector<2x64xbf16>, vector<64x64xbf16>, vector<2x64xf32> -> vector<2x64xf32>
    %c0_23 = arith.constant 0 : index
    %c0_24 = arith.constant 0 : index
    %46 = vector.load %arg9[%c0_23, %c0_24] : memref<1x64xbf16, #tpu.memory_space<vmem>>, vector<1x64xbf16>
    %47 = arith.extf %46 : vector<1x64xbf16> to vector<1x64xf32>
    %48 = vector.broadcast %47 : vector<1x64xf32> to vector<2x64xf32>
    %49 = arith.addf %45, %48 : vector<2x64xf32>
    %50 = arith.negf %49 : vector<2x64xf32>
    %51 = math.exp %50 : vector<2x64xf32>
    %cst_25 = arith.constant 1.000000e+00 : f32
    %52 = vector.broadcast %cst_25 : f32 to vector<2x64xf32>
    %53 = arith.addf %52, %51 : vector<2x64xf32>
    %54 = arith.divf %52, %53 : vector<2x64xf32>
    %55 = arith.mulf %49, %54 : vector<2x64xf32>
    %56 = arith.truncf %55 : vector<2x64xf32> to vector<2x64xbf16>
    %c0_26 = arith.constant 0 : index
    %c0_27 = arith.constant 0 : index
    %57 = vector.load %arg10[%c0_26, %c0_27] : memref<64x32xbf16, #tpu.memory_space<vmem>>, vector<64x32xbf16>
    %cst_28 = arith.constant dense<0.000000e+00> : vector<2x32xf32>
    %58 = tpu.matmul %56, %57, %cst_28 {dimension_numbers = #tpu.dot_dimension_numbers<[1], [0], [0], [1], [0, 0, 1, 1], [], []>} : vector<2x64xbf16>, vector<64x32xbf16>, vector<2x32xf32> -> vector<2x32xf32>
    %c0_29 = arith.constant 0 : index
    %c0_30 = arith.constant 0 : index
    %59 = vector.load %arg11[%c0_29, %c0_30] : memref<1x32xbf16, #tpu.memory_space<vmem>>, vector<1x32xbf16>
    %60 = arith.extf %59 : vector<1x32xbf16> to vector<1x32xf32>
    %61 = vector.broadcast %60 : vector<1x32xf32> to vector<2x32xf32>
    %62 = arith.addf %58, %61 : vector<2x32xf32>
    %63 = arith.negf %62 : vector<2x32xf32>
    %64 = math.exp %63 : vector<2x32xf32>
    %cst_31 = arith.constant 1.000000e+00 : f32
    %65 = vector.broadcast %cst_31 : f32 to vector<2x32xf32>
    %66 = arith.addf %65, %64 : vector<2x32xf32>
    %67 = arith.divf %65, %66 : vector<2x32xf32>
    %68 = arith.mulf %62, %67 : vector<2x32xf32>
    %69 = arith.truncf %68 : vector<2x32xf32> to vector<2x32xbf16>
    %c0_32 = arith.constant 0 : index
    %c0_33 = arith.constant 0 : index
    %70 = vector.load %arg12[%c0_32, %c0_33] : memref<32x32xbf16, #tpu.memory_space<vmem>>, vector<32x32xbf16>
    %cst_34 = arith.constant dense<0.000000e+00> : vector<2x32xf32>
    %71 = tpu.matmul %69, %70, %cst_34 {dimension_numbers = #tpu.dot_dimension_numbers<[1], [0], [0], [1], [0, 0, 1, 1], [], []>} : vector<2x32xbf16>, vector<32x32xbf16>, vector<2x32xf32> -> vector<2x32xf32>
    %c0_35 = arith.constant 0 : index
    %c0_36 = arith.constant 0 : index
    %72 = vector.load %arg13[%c0_35, %c0_36] : memref<1x32xbf16, #tpu.memory_space<vmem>>, vector<1x32xbf16>
    %73 = arith.extf %72 : vector<1x32xbf16> to vector<1x32xf32>
    %74 = vector.broadcast %73 : vector<1x32xf32> to vector<2x32xf32>
    %75 = arith.addf %71, %74 : vector<2x32xf32>
    %76 = arith.negf %75 : vector<2x32xf32>
    %77 = math.exp %76 : vector<2x32xf32>
    %cst_37 = arith.constant 1.000000e+00 : f32
    %78 = vector.broadcast %cst_37 : f32 to vector<2x32xf32>
    %79 = arith.addf %78, %77 : vector<2x32xf32>
    %80 = arith.divf %78, %79 : vector<2x32xf32>
    %81 = arith.mulf %75, %80 : vector<2x32xf32>
    %c0_38 = arith.constant 0 : index
    %c0_39 = arith.constant 0 : index
    %82 = vector.load %arg14[%c0_38, %c0_39] : memref<1x32xbf16, #tpu.memory_space<vmem>>, vector<1x32xbf16>
    %83 = arith.extf %82 : vector<1x32xbf16> to vector<1x32xf32>
    %84 = vector.broadcast %83 : vector<1x32xf32> to vector<2x32xf32>
    %85 = arith.mulf %81, %84 : vector<2x32xf32>
    %cst_40 = arith.constant dense<0.000000e+00> : vector<2xf32>
    %86 = vector.multi_reduction <add>, %85, %cst_40 [1] : vector<2x32xf32> to vector<2xf32>
    %87 = vector.shape_cast %86 : vector<2xf32> to vector<2x1xf32>
    %c0_41 = arith.constant 0 : index
    %c0_42 = arith.constant 0 : index
    %88 = vector.load %arg15[%c0_41, %c0_42] : memref<1x1xbf16, #tpu.memory_space<vmem>>, vector<1x1xbf16>
    %89 = arith.extf %88 : vector<1x1xbf16> to vector<1x1xf32>
    %90 = vector.broadcast %89 : vector<1x1xf32> to vector<2x1xf32>
    %91 = arith.addf %87, %90 : vector<2x1xf32>
    %c0_43 = arith.constant 0 : index
    %c0_44 = arith.constant 0 : index
    %92 = vector.load %arg16[%c0_43, %c0_44] : memref<2x1xf32, #tpu.memory_space<vmem>>, vector<2x1xf32>
    tpu.vector_store %arg16[%c0_43, %c0_44], %91 {strides = array<i32>} : memref<2x1xf32, #tpu.memory_space<vmem>>, vector<2x1xf32>,
    return
  }
  func.func @transform_0(%arg0: i32) -> (i32, i32, i32) {
    %c0_i32 = arith.constant 0 : i32
    %c0_i32_0 = arith.constant 0 : i32
    %c0_i32_1 = arith.constant 0 : i32
    return %arg0, %c0_i32, %c0_i32_0 : i32, i32, i32
  }
  func.func @transform_1(%arg0: i32) -> (i32, i32) {
    %c0_i32 = arith.constant 0 : i32
    %c0_i32_0 = arith.constant 0 : i32
    return %arg0, %c0_i32 : i32, i32
  }
  func.func @transform_2(%arg0: i32) -> (i32, i32) {
    %c0_i32 = arith.constant 0 : i32
    %c0_i32_0 = arith.constant 0 : i32
    %c0_i32_1 = arith.constant 0 : i32
    return %c0_i32, %c0_i32_0 : i32, i32
  }
  func.func @transform_3(%arg0: i32) -> (i32, i32) {
    %c0_i32 = arith.constant 0 : i32
    %c0_i32_0 = arith.constant 0 : i32
    %c0_i32_1 = arith.constant 0 : i32
    return %c0_i32, %c0_i32_0 : i32, i32
  }
  func.func @transform_4(%arg0: i32) -> (i32, i32) {
    %c0_i32 = arith.constant 0 : i32
    %c0_i32_0 = arith.constant 0 : i32
    %c0_i32_1 = arith.constant 0 : i32
    return %c0_i32, %c0_i32_0 : i32, i32
  }
  func.func @transform_5(%arg0: i32) -> (i32, i32) {
    %c0_i32 = arith.constant 0 : i32
    %c0_i32_0 = arith.constant 0 : i32
    %c0_i32_1 = arith.constant 0 : i32
    return %c0_i32, %c0_i32_0 : i32, i32
  }
  func.func @transform_6(%arg0: i32) -> (i32, i32) {
    %c0_i32 = arith.constant 0 : i32
    %c0_i32_0 = arith.constant 0 : i32
    %c0_i32_1 = arith.constant 0 : i32
    return %c0_i32, %c0_i32_0 : i32, i32
  }
  func.func @transform_7(%arg0: i32) -> (i32, i32) {
    %c0_i32 = arith.constant 0 : i32
    %c0_i32_0 = arith.constant 0 : i32
    %c0_i32_1 = arith.constant 0 : i32
    return %c0_i32, %c0_i32_0 : i32, i32
  }
  func.func @transform_8(%arg0: i32) -> (i32, i32) {
    %c0_i32 = arith.constant 0 : i32
    %c0_i32_0 = arith.constant 0 : i32
    %c0_i32_1 = arith.constant 0 : i32
    return %c0_i32, %c0_i32_0 : i32, i32
  }
  func.func @transform_9(%arg0: i32) -> (i32, i32) {
    %c0_i32 = arith.constant 0 : i32
    %c0_i32_0 = arith.constant 0 : i32
    %c0_i32_1 = arith.constant 0 : i32
    return %c0_i32, %c0_i32_0 : i32, i32
  }
  func.func @transform_10(%arg0: i32) -> (i32, i32) {
    %c0_i32 = arith.constant 0 : i32
    %c0_i32_0 = arith.constant 0 : i32
    %c0_i32_1 = arith.constant 0 : i32
    return %c0_i32, %c0_i32_0 : i32, i32
  }
  func.func @transform_11(%arg0: i32) -> (i32, i32) {
    %c0_i32 = arith.constant 0 : i32
    %c0_i32_0 = arith.constant 0 : i32
    %c0_i32_1 = arith.constant 0 : i32
    return %c0_i32, %c0_i32_0 : i32, i32
  }
  func.func @transform_12(%arg0: i32) -> (i32, i32) {
    %c0_i32 = arith.constant 0 : i32
    %c0_i32_0 = arith.constant 0 : i32
    %c0_i32_1 = arith.constant 0 : i32
    return %c0_i32, %c0_i32_0 : i32, i32
  }
  func.func @transform_13(%arg0: i32) -> (i32, i32) {
    %c0_i32 = arith.constant 0 : i32
    %c0_i32_0 = arith.constant 0 : i32
    %c0_i32_1 = arith.constant 0 : i32
    return %c0_i32, %c0_i32_0 : i32, i32
  }
  func.func @transform_14(%arg0: i32) -> (i32, i32) {
    %c0_i32 = arith.constant 0 : i32
    %c0_i32_0 = arith.constant 0 : i32
    %c0_i32_1 = arith.constant 0 : i32
    return %c0_i32, %c0_i32_0 : i32, i32
  }
  func.func @transform_15(%arg0: i32) -> (i32, i32) {
    %c0_i32 = arith.constant 0 : i32
    %c0_i32_0 = arith.constant 0 : i32
    return %arg0, %c0_i32 : i32, i32
  }
}

</mosaic_0001>

<llo_original>
// kernel: tpu_custom_call.1
$region0: #{tpu_custom_call.1}
  #allocation0 [shape = 'u32[]', space=smem, size = 0x4, offset = 0x4, fixed_abs, tag = 'smem constant byte address 0x4 - core index']
  #allocation1 [shape = 'u32[72,128]{1,0:T(1,128)}', space=vmem, size = 0x9000, scoped, tag = 'internal scratch']
  #allocation2 [shape = 'bf16[1,1]{1,0:T(2,128)S(1)}', space=vmem, size = 0x200, scoped, tag = 'scoped memory for tpu_custom_call.1']
  %s0 = inlined_call_operand.vmem [shape: f32[2,128,64], index: 0, kind: input, shape index: {}]
  %s1 = inlined_call_operand.vmem [shape: f32[2,1], index: 1, kind: input, shape index: {}]
  %s2 = inlined_call_operand.vmem [shape: bf16[1,32], index: 2, kind: input, shape index: {}]
  %s3 = inlined_call_operand.vmem [shape: bf16[1,32], index: 3, kind: input, shape index: {}]
  %s4 = inlined_call_operand.vmem [shape: bf16[128,64], index: 4, kind: input, shape index: {}]
  %s5 = inlined_call_operand.vmem [shape: bf16[32,64], index: 5, kind: input, shape index: {}]
  %s6 = inlined_call_operand.vmem [shape: bf16[1,64], index: 6, kind: input, shape index: {}]
  %s7 = inlined_call_operand.vmem [shape: bf16[64,64], index: 7, kind: input, shape index: {}]
  %s8 = inlined_call_operand.vmem [shape: bf16[1,64], index: 8, kind: input, shape index: {}]
  %s9 = inlined_call_operand.vmem [shape: bf16[64,32], index: 9, kind: input, shape index: {}]
  %s10 = inlined_call_operand.vmem [shape: bf16[1,32], index: 10, kind: input, shape index: {}]
  %s11 = inlined_call_operand.vmem [shape: bf16[32,32], index: 11, kind: input, shape index: {}]
  %s12 = inlined_call_operand.vmem [shape: bf16[1,32], index: 12, kind: input, shape index: {}]
  %s13 = inlined_call_operand.vmem [shape: bf16[1,32], index: 13, kind: input, shape index: {}]
  %s14 = inlined_call_operand.<no memory space> [shape: bf16[1,1], index: 14, kind: input, shape index: {}]
  %s15 = inlined_call_operand.vmem [shape: f32[2,1], index: 15, kind: output, shape index: {}]
  %s16 = sld [smem:[#allocation0]]
  $region70: #{tpu_custom_call.1} parent=0
    _
  %s18 = ssub.s32 1, %s16
  %s19 = scalar_select 0, %s18, %s16
  %v20 = vstv %s14
  %21 = vst [vmem:[#allocation2] sm:$0x1] %v20
  // Predicated region
  $region2: #{tpu_custom_call.1} parent=0 // pred_check
    _
  $region3: #{tpu_custom_call.1} parent=0 // pred_check_branch
    %23 = sbr.rel (0) target = $region5
  $region4: #{tpu_custom_call.1} parent=0 // pred_region
    _
  $region5: #{tpu_custom_call.1} parent=0 // pred_fallthru
    _
  // Predicated region
  $region6: #{tpu_custom_call.1} parent=0 // pred_check
    _
  $region7: #{tpu_custom_call.1} parent=0 // pred_check_branch
    %25 = sbr.rel (0) target = $region9
  $region8: #{tpu_custom_call.1} parent=0 // pred_region
    _
  $region9: #{tpu_custom_call.1} parent=0 // pred_fallthru
    _
  // Predicated region
  $region10: #{tpu_custom_call.1} parent=0 // pred_check
    _
  $region11: #{tpu_custom_call.1} parent=0 // pred_check_branch
    %27 = sbr.rel (0) target = $region13
  $region12: #{tpu_custom_call.1} parent=0 // pred_region
    _
  $region13: #{tpu_custom_call.1} parent=0 // pred_fallthru
    _
  // Predicated region
  $region14: #{tpu_custom_call.1} parent=0 // pred_check
    _
  $region15: #{tpu_custom_call.1} parent=0 // pred_check_branch
    %29 = sbr.rel (0) target = $region17
  $region16: #{tpu_custom_call.1} parent=0 // pred_region
    _
  $region17: #{tpu_custom_call.1} parent=0 // pred_fallthru
    _
  // Predicated region
  $region18: #{tpu_custom_call.1} parent=0 // pred_check
    _
  $region19: #{tpu_custom_call.1} parent=0 // pred_check_branch
    %31 = sbr.rel (0) target = $region21
  $region20: #{tpu_custom_call.1} parent=0 // pred_region
    _
  $region21: #{tpu_custom_call.1} parent=0 // pred_fallthru
    _
  // Predicated region
  $region22: #{tpu_custom_call.1} parent=0 // pred_check
    _
  $region23: #{tpu_custom_call.1} parent=0 // pred_check_branch
    %33 = sbr.rel (0) target = $region25
  $region24: #{tpu_custom_call.1} parent=0 // pred_region
    _
  $region25: #{tpu_custom_call.1} parent=0 // pred_fallthru
    _
  // Predicated region
  $region26: #{tpu_custom_call.1} parent=0 // pred_check
    _
  $region27: #{tpu_custom_call.1} parent=0 // pred_check_branch
    %35 = sbr.rel (0) target = $region29
  $region28: #{tpu_custom_call.1} parent=0 // pred_region
    _
  $region29: #{tpu_custom_call.1} parent=0 // pred_fallthru
    _
  // Predicated region
  $region30: #{tpu_custom_call.1} parent=0 // pred_check
    _
  $region31: #{tpu_custom_call.1} parent=0 // pred_check_branch
    %37 = sbr.rel (0) target = $region33
  $region32: #{tpu_custom_call.1} parent=0 // pred_region
    _
  $region33: #{tpu_custom_call.1} parent=0 // pred_fallthru
    _
  // Predicated region
  $region34: #{tpu_custom_call.1} parent=0 // pred_check
    _
  $region35: #{tpu_custom_call.1} parent=0 // pred_check_branch
    %39 = sbr.rel (0) target = $region37
  $region36: #{tpu_custom_call.1} parent=0 // pred_region
    _
  $region37: #{tpu_custom_call.1} parent=0 // pred_fallthru
    _
  // Predicated region
  $region38: #{tpu_custom_call.1} parent=0 // pred_check
    _
  $region39: #{tpu_custom_call.1} parent=0 // pred_check_branch
    %41 = sbr.rel (0) target = $region41
  $region40: #{tpu_custom_call.1} parent=0 // pred_region
    _
  $region41: #{tpu_custom_call.1} parent=0 // pred_fallthru
    _
  // Predicated region
  $region42: #{tpu_custom_call.1} parent=0 // pred_check
    _
  $region43: #{tpu_custom_call.1} parent=0 // pred_check_branch
    %43 = sbr.rel (0) target = $region45
  $region44: #{tpu_custom_call.1} parent=0 // pred_region
    _
  $region45: #{tpu_custom_call.1} parent=0 // pred_fallthru
    _
  // Predicated region
  $region46: #{tpu_custom_call.1} parent=0 // pred_check
    _
  $region47: #{tpu_custom_call.1} parent=0 // pred_check_branch
    %45 = sbr.rel (0) target = $region49
  $region48: #{tpu_custom_call.1} parent=0 // pred_region
    _
  $region49: #{tpu_custom_call.1} parent=0 // pred_fallthru
    _
  // Predicated region
  $region50: #{tpu_custom_call.1} parent=0 // pred_check
    _
  $region51: #{tpu_custom_call.1} parent=0 // pred_check_branch
    %47 = sbr.rel (0) target = $region53
  $region52: #{tpu_custom_call.1} parent=0 // pred_region
    _
  $region53: #{tpu_custom_call.1} parent=0 // pred_fallthru
    _
  // Predicated region
  $region54: #{tpu_custom_call.1} parent=0 // pred_check
    _
  $region55: #{tpu_custom_call.1} parent=0 // pred_check_branch
    %49 = sbr.rel (0) target = $region57
  $region56: #{tpu_custom_call.1} parent=0 // pred_region
    _
  $region57: #{tpu_custom_call.1} parent=0 // pred_fallthru
    _
  // Predicated region
  $region58: #{tpu_custom_call.1} parent=0 // pred_check
    _
  $region59: #{tpu_custom_call.1} parent=0 // pred_check_branch
    %51 = sbr.rel (0) target = $region61
  $region60: #{tpu_custom_call.1} parent=0 // pred_region
    _
  $region61: #{tpu_custom_call.1} parent=0 // pred_fallthru
    _
  %v53 = vld [vmem:[%s0] sm:$0xff]
  %v54 = vld [vmem:[%s0 + $0x8] sm:$0xff]
  %v55 = vld [vmem:[%s0 + $0x10] sm:$0xff]
  %v56 = vld [vmem:[%s0 + $0x18] sm:$0xff]
  %v57 = vld [vmem:[%s0 + $0x20] sm:$0xff]
  %v58 = vld [vmem:[%s0 + $0x28] sm:$0xff]
  %v59 = vld [vmem:[%s0 + $0x30] sm:$0xff]
  %v60 = vld [vmem:[%s0 + $0x38] sm:$0xff]
  %v61 = vld [vmem:[%s0 + $0x40] sm:$0xff]
  %v62 = vld [vmem:[%s0 + $0x48] sm:$0xff]
  %v63 = vld [vmem:[%s0 + $0x50] sm:$0xff]
  %v64 = vld [vmem:[%s0 + $0x58] sm:$0xff]
  %v65 = vld [vmem:[%s0 + $0x60] sm:$0xff]
  %v66 = vld [vmem:[%s0 + $0x68] sm:$0xff]
  %v67 = vld [vmem:[%s0 + $0x70] sm:$0xff]
  %v68 = vld [vmem:[%s0 + $0x78] sm:$0xff]
  %v69 = vld [vmem:[%s0 + $0x80] sm:$0xff]
  %v70 = vld [vmem:[%s0 + $0x88] sm:$0xff]
  %v71 = vld [vmem:[%s0 + $0x90] sm:$0xff]
  %v72 = vld [vmem:[%s0 + $0x98] sm:$0xff]
  %v73 = vld [vmem:[%s0 + $0xa0] sm:$0xff]
  %v74 = vld [vmem:[%s0 + $0xa8] sm:$0xff]
  %v75 = vld [vmem:[%s0 + $0xb0] sm:$0xff]
  %v76 = vld [vmem:[%s0 + $0xb8] sm:$0xff]
  %v77 = vld [vmem:[%s0 + $0xc0] sm:$0xff]
  %v78 = vld [vmem:[%s0 + $0xc8] sm:$0xff]
  %v79 = vld [vmem:[%s0 + $0xd0] sm:$0xff]
  %v80 = vld [vmem:[%s0 + $0xd8] sm:$0xff]
  %v81 = vld [vmem:[%s0 + $0xe0] sm:$0xff]
  %v82 = vld [vmem:[%s0 + $0xe8] sm:$0xff]
  %v83 = vld [vmem:[%s0 + $0xf0] sm:$0xff]
  %v84 = vld [vmem:[%s0 + $0xf8] sm:$0xff]
  %vm85 = vcmask 523264
  %v86 = vsel %vm85, %v53, 0.0
  %87 = vadd.xlane.f32.xlu0 %v86
  %v88 = vpop.xlane.xlu0 %87
  %v89 = vsel %vm85, %v54, 0.0
  %90 = vadd.xlane.f32.xlu0 %v89
  %v91 = vpop.xlane.xlu0 %90
  %v92 = vsel %vm85, %v55, 0.0
  %93 = vadd.xlane.f32.xlu0 %v92
  %v94 = vpop.xlane.xlu0 %93
  %v95 = vsel %vm85, %v56, 0.0
  %96 = vadd.xlane.f32.xlu0 %v95
  %v97 = vpop.xlane.xlu0 %96
  %v98 = vsel %vm85, %v57, 0.0
  %99 = vadd.xlane.f32.xlu0 %v98
  %v100 = vpop.xlane.xlu0 %99
  %v101 = vsel %vm85, %v58, 0.0
  %102 = vadd.xlane.f32.xlu0 %v101
  %v103 = vpop.xlane.xlu0 %102
  %v104 = vsel %vm85, %v59, 0.0
  %105 = vadd.xlane.f32.xlu0 %v104
  %v106 = vpop.xlane.xlu0 %105
  %v107 = vsel %vm85, %v60, 0.0
  %108 = vadd.xlane.f32.xlu0 %v107
  %v109 = vpop.xlane.xlu0 %108
  %v110 = vsel %vm85, %v61, 0.0
  %111 = vadd.xlane.f32.xlu0 %v110
  %v112 = vpop.xlane.xlu0 %111
  %v113 = vsel %vm85, %v62, 0.0
  %114 = vadd.xlane.f32.xlu0 %v113
  %v115 = vpop.xlane.xlu0 %114
  %v116 = vsel %vm85, %v63, 0.0
  %117 = vadd.xlane.f32.xlu0 %v116
  %v118 = vpop.xlane.xlu0 %117
  %v119 = vsel %vm85, %v64, 0.0
  %120 = vadd.xlane.f32.xlu0 %v119
  %v121 = vpop.xlane.xlu0 %120
  %v122 = vsel %vm85, %v65, 0.0
  %123 = vadd.xlane.f32.xlu0 %v122
  %v124 = vpop.xlane.xlu0 %123
  %v125 = vsel %vm85, %v66, 0.0
  %126 = vadd.xlane.f32.xlu0 %v125
  %v127 = vpop.xlane.xlu0 %126
  %v128 = vsel %vm85, %v67, 0.0
  %129 = vadd.xlane.f32.xlu0 %v128
  %v130 = vpop.xlane.xlu0 %129
  %v131 = vsel %vm85, %v68, 0.0
  %132 = vadd.xlane.f32.xlu0 %v131
  %v133 = vpop.xlane.xlu0 %132
  %v134 = vsel %vm85, %v69, 0.0
  %135 = vadd.xlane.f32.xlu0 %v134
  %v136 = vpop.xlane.xlu0 %135
  %v137 = vsel %vm85, %v70, 0.0
  %138 = vadd.xlane.f32.xlu0 %v137
  %v139 = vpop.xlane.xlu0 %138
  %v140 = vsel %vm85, %v71, 0.0
  %141 = vadd.xlane.f32.xlu0 %v140
  %v142 = vpop.xlane.xlu0 %141
  %v143 = vsel %vm85, %v72, 0.0
  %144 = vadd.xlane.f32.xlu0 %v143
  %v145 = vpop.xlane.xlu0 %144
  %v146 = vsel %vm85, %v73, 0.0
  %147 = vadd.xlane.f32.xlu0 %v146
  %v148 = vpop.xlane.xlu0 %147
  %v149 = vsel %vm85, %v74, 0.0
  %150 = vadd.xlane.f32.xlu0 %v149
  %v151 = vpop.xlane.xlu0 %150
  %v152 = vsel %vm85, %v75, 0.0
  %153 = vadd.xlane.f32.xlu0 %v152
  %v154 = vpop.xlane.xlu0 %153
  %v155 = vsel %vm85, %v76, 0.0
  %156 = vadd.xlane.f32.xlu0 %v155
  %v157 = vpop.xlane.xlu0 %156
  %v158 = vsel %vm85, %v77, 0.0
  %159 = vadd.xlane.f32.xlu0 %v158
  %v160 = vpop.xlane.xlu0 %159
  %v161 = vsel %vm85, %v78, 0.0
  %162 = vadd.xlane.f32.xlu0 %v161
  %v163 = vpop.xlane.xlu0 %162
  %v164 = vsel %vm85, %v79, 0.0
  %165 = vadd.xlane.f32.xlu0 %v164
  %v166 = vpop.xlane.xlu0 %165
  %v167 = vsel %vm85, %v80, 0.0
  %168 = vadd.xlane.f32.xlu0 %v167
  %v169 = vpop.xlane.xlu0 %168
  %v170 = vsel %vm85, %v81, 0.0
  %171 = vadd.xlane.f32.xlu0 %v170
  %v172 = vpop.xlane.xlu0 %171
  %v173 = vsel %vm85, %v82, 0.0
  %174 = vadd.xlane.f32.xlu0 %v173
  %v175 = vpop.xlane.xlu0 %174
  %v176 = vsel %vm85, %v83, 0.0
  %177 = vadd.xlane.f32.xlu0 %v176
  %v178 = vpop.xlane.xlu0 %177
  %v179 = vsel %vm85, %v84, 0.0
  %180 = vadd.xlane.f32.xlu0 %v179
  %v181 = vpop.xlane.xlu0 %180
  %v182 = vmul.f32 %v88, 0.015625
  %v183 = vmul.f32 %v91, 0.015625
  %v184 = vmul.f32 %v94, 0.015625
  %v185 = vmul.f32 %v97, 0.015625
  %v186 = vmul.f32 %v100, 0.015625
  %v187 = vmul.f32 %v103, 0.015625
  %v188 = vmul.f32 %v106, 0.015625
  %v189 = vmul.f32 %v109, 0.015625
  %v190 = vmul.f32 %v112, 0.015625
  %v191 = vmul.f32 %v115, 0.015625
  %v192 = vmul.f32 %v118, 0.015625
  %v193 = vmul.f32 %v121, 0.015625
  %v194 = vmul.f32 %v124, 0.015625
  %v195 = vmul.f32 %v127, 0.015625
  %v196 = vmul.f32 %v130, 0.015625
  %v197 = vmul.f32 %v133, 0.015625
  %v198 = vmul.f32 %v136, 0.015625
  %v199 = vmul.f32 %v139, 0.015625
  %v200 = vmul.f32 %v142, 0.015625
  %v201 = vmul.f32 %v145, 0.015625
  %v202 = vmul.f32 %v148, 0.015625
  %v203 = vmul.f32 %v151, 0.015625
  %v204 = vmul.f32 %v154, 0.015625
  %v205 = vmul.f32 %v157, 0.015625
  %v206 = vmul.f32 %v160, 0.015625
  %v207 = vmul.f32 %v163, 0.015625
  %v208 = vmul.f32 %v166, 0.015625
  %v209 = vmul.f32 %v169, 0.015625
  %v210 = vmul.f32 %v172, 0.015625
  %v211 = vmul.f32 %v175, 0.015625
  %v212 = vmul.f32 %v178, 0.015625
  %v213 = vmul.f32 %v181, 0.015625
  %v214 = vxor.u32 %v182, 2147483648
  %v215 = vxor.u32 %v183, 2147483648
  %v216 = vxor.u32 %v184, 2147483648
  %v217 = vxor.u32 %v185, 2147483648
  %v218 = vxor.u32 %v186, 2147483648
  %v219 = vxor.u32 %v187, 2147483648
  %v220 = vxor.u32 %v188, 2147483648
  %v221 = vxor.u32 %v189, 2147483648
  %v222 = vxor.u32 %v190, 2147483648
  %v223 = vxor.u32 %v191, 2147483648
  %v224 = vxor.u32 %v192, 2147483648
  %v225 = vxor.u32 %v193, 2147483648
  %v226 = vxor.u32 %v194, 2147483648
  %v227 = vxor.u32 %v195, 2147483648
  %v228 = vxor.u32 %v196, 2147483648
  %v229 = vxor.u32 %v197, 2147483648
  %v230 = vxor.u32 %v198, 2147483648
  %v231 = vxor.u32 %v199, 2147483648
  %v232 = vxor.u32 %v200, 2147483648
  %v233 = vxor.u32 %v201, 2147483648
  %v234 = vxor.u32 %v202, 2147483648
  %v235 = vxor.u32 %v203, 2147483648
  %v236 = vxor.u32 %v204, 2147483648
  %v237 = vxor.u32 %v205, 2147483648
  %v238 = vxor.u32 %v206, 2147483648
  %v239 = vxor.u32 %v207, 2147483648
  %v240 = vxor.u32 %v208, 2147483648
  %v241 = vxor.u32 %v209, 2147483648
  %v242 = vxor.u32 %v210, 2147483648
  %v243 = vxor.u32 %v211, 2147483648
  %v244 = vxor.u32 %v212, 2147483648
  %v245 = vxor.u32 %v213, 2147483648
  %v246 = vmul.f32 %v214, 1.442695
  %v247 = vpow.pop %v246
  %v248 = vmul.f32 %v215, 1.442695
  %v249 = vpow.pop %v248
  %v250 = vmul.f32 %v216, 1.442695
  %v251 = vpow.pop %v250
  %v252 = vmul.f32 %v217, 1.442695
  %v253 = vpow.pop %v252
  %v254 = vmul.f32 %v218, 1.442695
  %v255 = vpow.pop %v254
  %v256 = vmul.f32 %v219, 1.442695
  %v257 = vpow.pop %v256
  %v258 = vmul.f32 %v220, 1.442695
  %v259 = vpow.pop %v258
  %v260 = vmul.f32 %v221, 1.442695
  %v261 = vpow.pop %v260
  %v262 = vmul.f32 %v222, 1.442695
  %v263 = vpow.pop %v262
  %v264 = vmul.f32 %v223, 1.442695
  %v265 = vpow.pop %v264
  %v266 = vmul.f32 %v224, 1.442695
  %v267 = vpow.pop %v266
  %v268 = vmul.f32 %v225, 1.442695
  %v269 = vpow.pop %v268
  %v270 = vmul.f32 %v226, 1.442695
  %v271 = vpow.pop %v270
  %v272 = vmul.f32 %v227, 1.442695
  %v273 = vpow.pop %v272
  %v274 = vmul.f32 %v228, 1.442695
  %v275 = vpow.pop %v274
  %v276 = vmul.f32 %v229, 1.442695
  %v277 = vpow.pop %v276
  %v278 = vmul.f32 %v230, 1.442695
  %v279 = vpow.pop %v278
  %v280 = vmul.f32 %v231, 1.442695
  %v281 = vpow.pop %v280
  %v282 = vmul.f32 %v232, 1.442695
  %v283 = vpow.pop %v282
  %v284 = vmul.f32 %v233, 1.442695
  %v285 = vpow.pop %v284
  %v286 = vmul.f32 %v234, 1.442695
  %v287 = vpow.pop %v286
  %v288 = vmul.f32 %v235, 1.442695
  %v289 = vpow.pop %v288
  %v290 = vmul.f32 %v236, 1.442695
  %v291 = vpow.pop %v290
  %v292 = vmul.f32 %v237, 1.442695
  %v293 = vpow.pop %v292
  %v294 = vmul.f32 %v238, 1.442695
  %v295 = vpow.pop %v294
  %v296 = vmul.f32 %v239, 1.442695
  %v297 = vpow.pop %v296
  %v298 = vmul.f32 %v240, 1.442695
  %v299 = vpow.pop %v298
  %v300 = vmul.f32 %v241, 1.442695
  %v301 = vpow.pop %v300
  %v302 = vmul.f32 %v242, 1.442695
  %v303 = vpow.pop %v302
  %v304 = vmul.f32 %v243, 1.442695
  %v305 = vpow.pop %v304
  %v306 = vmul.f32 %v244, 1.442695
  %v307 = vpow.pop %v306
  %v308 = vmul.f32 %v245, 1.442695
  %v309 = vpow.pop %v308
  %v310 = vadd.f32 %v247, 1.0
  %v311 = vadd.f32 %v249, 1.0
  %v312 = vadd.f32 %v251, 1.0
  %v313 = vadd.f32 %v253, 1.0
  %v314 = vadd.f32 %v255, 1.0
  %v315 = vadd.f32 %v257, 1.0
  %v316 = vadd.f32 %v259, 1.0
  %v317 = vadd.f32 %v261, 1.0
  %v318 = vadd.f32 %v263, 1.0
  %v319 = vadd.f32 %v265, 1.0
  %v320 = vadd.f32 %v267, 1.0
  %v321 = vadd.f32 %v269, 1.0
  %v322 = vadd.f32 %v271, 1.0
  %v323 = vadd.f32 %v273, 1.0
  %v324 = vadd.f32 %v275, 1.0
  %v325 = vadd.f32 %v277, 1.0
  %v326 = vadd.f32 %v279, 1.0
  %v327 = vadd.f32 %v281, 1.0
  %v328 = vadd.f32 %v283, 1.0
  %v329 = vadd.f32 %v285, 1.0
  %v330 = vadd.f32 %v287, 1.0
  %v331 = vadd.f32 %v289, 1.0
  %v332 = vadd.f32 %v291, 1.0
  %v333 = vadd.f32 %v293, 1.0
  %v334 = vadd.f32 %v295, 1.0
  %v335 = vadd.f32 %v297, 1.0
  %v336 = vadd.f32 %v299, 1.0
  %v337 = vadd.f32 %v301, 1.0
  %v338 = vadd.f32 %v303, 1.0
  %v339 = vadd.f32 %v305, 1.0
  %v340 = vadd.f32 %v307, 1.0
  %v341 = vadd.f32 %v309, 1.0
  %v342 = vrcp.pop %v310
  %v343 = vmul.f32 %v310, %v342
  %v344 = vsub.f32 1.0, %v343
  %v345 = vmul.f32 %v342, %v344
  %v346 = vadd.f32 %v342, %v345
  %vm347 = vweird.f32 %v310
  %vm348 = vweird.f32 %v342
  %vm349 = vmor %vm347, %vm348
  %v350 = vsel %vm349, %v342, %v346
  %v351 = vand.u32 2147483647, %v310
  %vm352 = vcmp.eq.f32.partialorder %v351, 8.507059e+37
  %v353 = vand.u32 %v310, 2147483648
  %v354 = vor.u32 1.1754944e-38, %v353
  %v355 = vsel %vm352, %v354, %v350
  %v356 = vmul.f32 1.0, %v355
  %v357 = vrcp.pop %v311
  %v358 = vmul.f32 %v311, %v357
  %v359 = vsub.f32 1.0, %v358
  %v360 = vmul.f32 %v357, %v359
  %v361 = vadd.f32 %v357, %v360
  %vm362 = vweird.f32 %v311
  %vm363 = vweird.f32 %v357
  %vm364 = vmor %vm362, %vm363
  %v365 = vsel %vm364, %v357, %v361
  %v366 = vand.u32 2147483647, %v311
  %vm367 = vcmp.eq.f32.partialorder %v366, 8.507059e+37
  %v368 = vand.u32 %v311, 2147483648
  %v369 = vor.u32 1.1754944e-38, %v368
  %v370 = vsel %vm367, %v369, %v365
  %v371 = vmul.f32 1.0, %v370
  %v372 = vrcp.pop %v312
  %v373 = vmul.f32 %v312, %v372
  %v374 = vsub.f32 1.0, %v373
  %v375 = vmul.f32 %v372, %v374
  %v376 = vadd.f32 %v372, %v375
  %vm377 = vweird.f32 %v312
  %vm378 = vweird.f32 %v372
  %vm379 = vmor %vm377, %vm378
  %v380 = vsel %vm379, %v372, %v376
  %v381 = vand.u32 2147483647, %v312
  %vm382 = vcmp.eq.f32.partialorder %v381, 8.507059e+37
  %v383 = vand.u32 %v312, 2147483648
  %v384 = vor.u32 1.1754944e-38, %v383
  %v385 = vsel %vm382, %v384, %v380
  %v386 = vmul.f32 1.0, %v385
  %v387 = vrcp.pop %v313
  %v388 = vmul.f32 %v313, %v387
  %v389 = vsub.f32 1.0, %v388
  %v390 = vmul.f32 %v387, %v389
  %v391 = vadd.f32 %v387, %v390
  %vm392 = vweird.f32 %v313
  %vm393 = vweird.f32 %v387
  %vm394 = vmor %vm392, %vm393
  %v395 = vsel %vm394, %v387, %v391
  %v396 = vand.u32 2147483647, %v313
  %vm397 = vcmp.eq.f32.partialorder %v396, 8.507059e+37
  %v398 = vand.u32 %v313, 2147483648
  %v399 = vor.u32 1.1754944e-38, %v398
  %v400 = vsel %vm397, %v399, %v395
  %v401 = vmul.f32 1.0, %v400
  %v402 = vrcp.pop %v314
  %v403 = vmul.f32 %v314, %v402
  %v404 = vsub.f32 1.0, %v403
  %v405 = vmul.f32 %v402, %v404
  %v406 = vadd.f32 %v402, %v405
  %vm407 = vweird.f32 %v314
  %vm408 = vweird.f32 %v402
  %vm409 = vmor %vm407, %vm408
  %v410 = vsel %vm409, %v402, %v406
  %v411 = vand.u32 2147483647, %v314
  %vm412 = vcmp.eq.f32.partialorder %v411, 8.507059e+37
  %v413 = vand.u32 %v314, 2147483648
  %v414 = vor.u32 1.1754944e-38, %v413
  %v415 = vsel %vm412, %v414, %v410
  %v416 = vmul.f32 1.0, %v415
  %v417 = vrcp.pop %v315
  %v418 = vmul.f32 %v315, %v417
  %v419 = vsub.f32 1.0, %v418
  %v420 = vmul.f32 %v417, %v419
  %v421 = vadd.f32 %v417, %v420
  %vm422 = vweird.f32 %v315
  %vm423 = vweird.f32 %v417
  %vm424 = vmor %vm422, %vm423
  %v425 = vsel %vm424, %v417, %v421
  %v426 = vand.u32 2147483647, %v315
  %vm427 = vcmp.eq.f32.partialorder %v426, 8.507059e+37
  %v428 = vand.u32 %v315, 2147483648
  %v429 = vor.u32 1.1754944e-38, %v428
  %v430 = vsel %vm427, %v429, %v425
  %v431 = vmul.f32 1.0, %v430
  %v432 = vrcp.pop %v316
  %v433 = vmul.f32 %v316, %v432
  %v434 = vsub.f32 1.0, %v433
  %v435 = vmul.f32 %v432, %v434
  %v436 = vadd.f32 %v432, %v435
  %vm437 = vweird.f32 %v316
  %vm438 = vweird.f32 %v432
  %vm439 = vmor %vm437, %vm438
  %v440 = vsel %vm439, %v432, %v436
  %v441 = vand.u32 2147483647, %v316
  %vm442 = vcmp.eq.f32.partialorder %v441, 8.507059e+37
  %v443 = vand.u32 %v316, 2147483648
  %v444 = vor.u32 1.1754944e-38, %v443
  %v445 = vsel %vm442, %v444, %v440
  %v446 = vmul.f32 1.0, %v445
  %v447 = vrcp.pop %v317
  %v448 = vmul.f32 %v317, %v447
  %v449 = vsub.f32 1.0, %v448
  %v450 = vmul.f32 %v447, %v449
  %v451 = vadd.f32 %v447, %v450
  %vm452 = vweird.f32 %v317
  %vm453 = vweird.f32 %v447
  %vm454 = vmor %vm452, %vm453
  %v455 = vsel %vm454, %v447, %v451
  %v456 = vand.u32 2147483647, %v317
  %vm457 = vcmp.eq.f32.partialorder %v456, 8.507059e+37
  %v458 = vand.u32 %v317, 2147483648
  %v459 = vor.u32 1.1754944e-38, %v458
  %v460 = vsel %vm457, %v459, %v455
  %v461 = vmul.f32 1.0, %v460
  %v462 = vrcp.pop %v318
  %v463 = vmul.f32 %v318, %v462
  %v464 = vsub.f32 1.0, %v463
  %v465 = vmul.f32 %v462, %v464
  %v466 = vadd.f32 %v462, %v465
  %vm467 = vweird.f32 %v318
  %vm468 = vweird.f32 %v462
  %vm469 = vmor %vm467, %vm468
  %v470 = vsel %vm469, %v462, %v466
  %v471 = vand.u32 2147483647, %v318
  %vm472 = vcmp.eq.f32.partialorder %v471, 8.507059e+37
  %v473 = vand.u32 %v318, 2147483648
  %v474 = vor.u32 1.1754944e-38, %v473
  %v475 = vsel %vm472, %v474, %v470
  %v476 = vmul.f32 1.0, %v475
  %v477 = vrcp.pop %v319
  %v478 = vmul.f32 %v319, %v477
  %v479 = vsub.f32 1.0, %v478
  %v480 = vmul.f32 %v477, %v479
  %v481 = vadd.f32 %v477, %v480
  %vm482 = vweird.f32 %v319
  %vm483 = vweird.f32 %v477
  %vm484 = vmor %vm482, %vm483
  %v485 = vsel %vm484, %v477, %v481
  %v486 = vand.u32 2147483647, %v319
  %vm487 = vcmp.eq.f32.partialorder %v486, 8.507059e+37
  %v488 = vand.u32 %v319, 2147483648
  %v489 = vor.u32 1.1754944e-38, %v488
  %v490 = vsel %vm487, %v489, %v485
  %v491 = vmul.f32 1.0, %v490
  %v492 = vrcp.pop %v320
  %v493 = vmul.f32 %v320, %v492
  %v494 = vsub.f32 1.0, %v493
  %v495 = vmul.f32 %v492, %v494
  %v496 = vadd.f32 %v492, %v495
  %vm497 = vweird.f32 %v320
  %vm498 = vweird.f32 %v492
  %vm499 = vmor %vm497, %vm498
  %v500 = vsel %vm499, %v492, %v496
  %v501 = vand.u32 2147483647, %v320
  %vm502 = vcmp.eq.f32.partialorder %v501, 8.507059e+37
  %v503 = vand.u32 %v320, 2147483648
  %v504 = vor.u32 1.1754944e-38, %v503
  %v505 = vsel %vm502, %v504, %v500
  %v506 = vmul.f32 1.0, %v505
  %v507 = vrcp.pop %v321
  %v508 = vmul.f32 %v321, %v507
  %v509 = vsub.f32 1.0, %v508
  %v510 = vmul.f32 %v507, %v509
  %v511 = vadd.f32 %v507, %v510
  %vm512 = vweird.f32 %v321
  %vm513 = vweird.f32 %v507
  %vm514 = vmor %vm512, %vm513
  %v515 = vsel %vm514, %v507, %v511
  %v516 = vand.u32 2147483647, %v321
  %vm517 = vcmp.eq.f32.partialorder %v516, 8.507059e+37
  %v518 = vand.u32 %v321, 2147483648
  %v519 = vor.u32 1.1754944e-38, %v518
  %v520 = vsel %vm517, %v519, %v515
  %v521 = vmul.f32 1.0, %v520
  %v522 = vrcp.pop %v322
  %v523 = vmul.f32 %v322, %v522
  %v524 = vsub.f32 1.0, %v523
  %v525 = vmul.f32 %v522, %v524
  %v526 = vadd.f32 %v522, %v525
  %vm527 = vweird.f32 %v322
  %vm528 = vweird.f32 %v522
  %vm529 = vmor %vm527, %vm528
  %v530 = vsel %vm529, %v522, %v526
  %v531 = vand.u32 2147483647, %v322
  %vm532 = vcmp.eq.f32.partialorder %v531, 8.507059e+37
  %v533 = vand.u32 %v322, 2147483648
  %v534 = vor.u32 1.1754944e-38, %v533
  %v535 = vsel %vm532, %v534, %v530
  %v536 = vmul.f32 1.0, %v535
  %v537 = vrcp.pop %v323
  %v538 = vmul.f32 %v323, %v537
  %v539 = vsub.f32 1.0, %v538
  %v540 = vmul.f32 %v537, %v539
  %v541 = vadd.f32 %v537, %v540
  %vm542 = vweird.f32 %v323
  %vm543 = vweird.f32 %v537
  %vm544 = vmor %vm542, %vm543
  %v545 = vsel %vm544, %v537, %v541
  %v546 = vand.u32 2147483647, %v323
  %vm547 = vcmp.eq.f32.partialorder %v546, 8.507059e+37
  %v548 = vand.u32 %v323, 2147483648
  %v549 = vor.u32 1.1754944e-38, %v548
  %v550 = vsel %vm547, %v549, %v545
  %v551 = vmul.f32 1.0, %v550
  %v552 = vrcp.pop %v324
  %v553 = vmul.f32 %v324, %v552
  %v554 = vsub.f32 1.0, %v553
  %v555 = vmul.f32 %v552, %v554
  %v556 = vadd.f32 %v552, %v555
  %vm557 = vweird.f32 %v324
  %vm558 = vweird.f32 %v552
  %vm559 = vmor %vm557, %vm558
  %v560 = vsel %vm559, %v552, %v556
  %v561 = vand.u32 2147483647, %v324
  %vm562 = vcmp.eq.f32.partialorder %v561, 8.507059e+37
  %v563 = vand.u32 %v324, 2147483648
  %v564 = vor.u32 1.1754944e-38, %v563
  %v565 = vsel %vm562, %v564, %v560
  %v566 = vmul.f32 1.0, %v565
  %v567 = vrcp.pop %v325
  %v568 = vmul.f32 %v325, %v567
  %v569 = vsub.f32 1.0, %v568
  %v570 = vmul.f32 %v567, %v569
  %v571 = vadd.f32 %v567, %v570
  %vm572 = vweird.f32 %v325
  %vm573 = vweird.f32 %v567
  %vm574 = vmor %vm572, %vm573
  %v575 = vsel %vm574, %v567, %v571
  %v576 = vand.u32 2147483647, %v325
  %vm577 = vcmp.eq.f32.partialorder %v576, 8.507059e+37
  %v578 = vand.u32 %v325, 2147483648
  %v579 = vor.u32 1.1754944e-38, %v578
  %v580 = vsel %vm577, %v579, %v575
  %v581 = vmul.f32 1.0, %v580
  %v582 = vrcp.pop %v326
  %v583 = vmul.f32 %v326, %v582
  %v584 = vsub.f32 1.0, %v583
  %v585 = vmul.f32 %v582, %v584
  %v586 = vadd.f32 %v582, %v585
  %vm587 = vweird.f32 %v326
  %vm588 = vweird.f32 %v582
  %vm589 = vmor %vm587, %vm588
  %v590 = vsel %vm589, %v582, %v586
  %v591 = vand.u32 2147483647, %v326
  %vm592 = vcmp.eq.f32.partialorder %v591, 8.507059e+37
  %v593 = vand.u32 %v326, 2147483648
  %v594 = vor.u32 1.1754944e-38, %v593
  %v595 = vsel %vm592, %v594, %v590
  %v596 = vmul.f32 1.0, %v595
  %v597 = vrcp.pop %v327
  %v598 = vmul.f32 %v327, %v597
  %v599 = vsub.f32 1.0, %v598
  %v600 = vmul.f32 %v597, %v599
  %v601 = vadd.f32 %v597, %v600
  %vm602 = vweird.f32 %v327
  %vm603 = vweird.f32 %v597
  %vm604 = vmor %vm602, %vm603
  %v605 = vsel %vm604, %v597, %v601
  %v606 = vand.u32 2147483647, %v327
  %vm607 = vcmp.eq.f32.partialorder %v606, 8.507059e+37
  %v608 = vand.u32 %v327, 2147483648
  %v609 = vor.u32 1.1754944e-38, %v608
  %v610 = vsel %vm607, %v609, %v605
  %v611 = vmul.f32 1.0, %v610
  %v612 = vrcp.pop %v328
  %v613 = vmul.f32 %v328, %v612
  %v614 = vsub.f32 1.0, %v613
  %v615 = vmul.f32 %v612, %v614
  %v616 = vadd.f32 %v612, %v615
  %vm617 = vweird.f32 %v328
  %vm618 = vweird.f32 %v612
  %vm619 = vmor %vm617, %vm618
  %v620 = vsel %vm619, %v612, %v616
  %v621 = vand.u32 2147483647, %v328
  %vm622 = vcmp.eq.f32.partialorder %v621, 8.507059e+37
  %v623 = vand.u32 %v328, 2147483648
  %v624 = vor.u32 1.1754944e-38, %v623
  %v625 = vsel %vm622, %v624, %v620
  %v626 = vmul.f32 1.0, %v625
  %v627 = vrcp.pop %v329
  %v628 = vmul.f32 %v329, %v627
  %v629 = vsub.f32 1.0, %v628
  %v630 = vmul.f32 %v627, %v629
  %v631 = vadd.f32 %v627, %v630
  %vm632 = vweird.f32 %v329
  %vm633 = vweird.f32 %v627
  %vm634 = vmor %vm632, %vm633
  %v635 = vsel %vm634, %v627, %v631
  %v636 = vand.u32 2147483647, %v329
  %vm637 = vcmp.eq.f32.partialorder %v636, 8.507059e+37
  %v638 = vand.u32 %v329, 2147483648
  %v639 = vor.u32 1.1754944e-38, %v638
  %v640 = vsel %vm637, %v639, %v635
  %v641 = vmul.f32 1.0, %v640
  %v642 = vrcp.pop %v330
  %v643 = vmul.f32 %v330, %v642
  %v644 = vsub.f32 1.0, %v643
  %v645 = vmul.f32 %v642, %v644
  %v646 = vadd.f32 %v642, %v645
  %vm647 = vweird.f32 %v330
  %vm648 = vweird.f32 %v642
  %vm649 = vmor %vm647, %vm648
  %v650 = vsel %vm649, %v642, %v646
  %v651 = vand.u32 2147483647, %v330
  %vm652 = vcmp.eq.f32.partialorder %v651, 8.507059e+37
  %v653 = vand.u32 %v330, 2147483648
  %v654 = vor.u32 1.1754944e-38, %v653
  %v655 = vsel %vm652, %v654, %v650
  %v656 = vmul.f32 1.0, %v655
  %v657 = vrcp.pop %v331
  %v658 = vmul.f32 %v331, %v657
  %v659 = vsub.f32 1.0, %v658
  %v660 = vmul.f32 %v657, %v659
  %v661 = vadd.f32 %v657, %v660
  %vm662 = vweird.f32 %v331
  %vm663 = vweird.f32 %v657
  %vm664 = vmor %vm662, %vm663
  %v665 = vsel %vm664, %v657, %v661
  %v666 = vand.u32 2147483647, %v331
  %vm667 = vcmp.eq.f32.partialorder %v666, 8.507059e+37
  %v668 = vand.u32 %v331, 2147483648
  %v669 = vor.u32 1.1754944e-38, %v668
  %v670 = vsel %vm667, %v669, %v665
  %v671 = vmul.f32 1.0, %v670
  %v672 = vrcp.pop %v332
  %v673 = vmul.f32 %v332, %v672
  %v674 = vsub.f32 1.0, %v673
  %v675 = vmul.f32 %v672, %v674
  %v676 = vadd.f32 %v672, %v675
  %vm677 = vweird.f32 %v332
  %vm678 = vweird.f32 %v672
  %vm679 = vmor %vm677, %vm678
  %v680 = vsel %vm679, %v672, %v676
  %v681 = vand.u32 2147483647, %v332
  %vm682 = vcmp.eq.f32.partialorder %v681, 8.507059e+37
  %v683 = vand.u32 %v332, 2147483648
  %v684 = vor.u32 1.1754944e-38, %v683
  %v685 = vsel %vm682, %v684, %v680
  %v686 = vmul.f32 1.0, %v685
  %v687 = vrcp.pop %v333
  %v688 = vmul.f32 %v333, %v687
  %v689 = vsub.f32 1.0, %v688
  %v690 = vmul.f32 %v687, %v689
  %v691 = vadd.f32 %v687, %v690
  %vm692 = vweird.f32 %v333
  %vm693 = vweird.f32 %v687
  %vm694 = vmor %vm692, %vm693
  %v695 = vsel %vm694, %v687, %v691
  %v696 = vand.u32 2147483647, %v333
  %vm697 = vcmp.eq.f32.partialorder %v696, 8.507059e+37
  %v698 = vand.u32 %v333, 2147483648
  %v699 = vor.u32 1.1754944e-38, %v698
  %v700 = vsel %vm697, %v699, %v695
  %v701 = vmul.f32 1.0, %v700
  %v702 = vrcp.pop %v334
  %v703 = vmul.f32 %v334, %v702
  %v704 = vsub.f32 1.0, %v703
  %v705 = vmul.f32 %v702, %v704
  %v706 = vadd.f32 %v702, %v705
  %vm707 = vweird.f32 %v334
  %vm708 = vweird.f32 %v702
  %vm709 = vmor %vm707, %vm708
  %v710 = vsel %vm709, %v702, %v706
  %v711 = vand.u32 2147483647, %v334
  %vm712 = vcmp.eq.f32.partialorder %v711, 8.507059e+37
  %v713 = vand.u32 %v334, 2147483648
  %v714 = vor.u32 1.1754944e-38, %v713
  %v715 = vsel %vm712, %v714, %v710
  %v716 = vmul.f32 1.0, %v715
  %v717 = vrcp.pop %v335
  %v718 = vmul.f32 %v335, %v717
  %v719 = vsub.f32 1.0, %v718
  %v720 = vmul.f32 %v717, %v719
  %v721 = vadd.f32 %v717, %v720
  %vm722 = vweird.f32 %v335
  %vm723 = vweird.f32 %v717
  %vm724 = vmor %vm722, %vm723
  %v725 = vsel %vm724, %v717, %v721
  %v726 = vand.u32 2147483647, %v335
  %vm727 = vcmp.eq.f32.partialorder %v726, 8.507059e+37
  %v728 = vand.u32 %v335, 2147483648
  %v729 = vor.u32 1.1754944e-38, %v728
  %v730 = vsel %vm727, %v729, %v725
  %v731 = vmul.f32 1.0, %v730
  %v732 = vrcp.pop %v336
  %v733 = vmul.f32 %v336, %v732
  %v734 = vsub.f32 1.0, %v733
  %v735 = vmul.f32 %v732, %v734
  %v736 = vadd.f32 %v732, %v735
  %vm737 = vweird.f32 %v336
  %vm738 = vweird.f32 %v732
  %vm739 = vmor %vm737, %vm738
  %v740 = vsel %vm739, %v732, %v736
  %v741 = vand.u32 2147483647, %v336
  %vm742 = vcmp.eq.f32.partialorder %v741, 8.507059e+37
  %v743 = vand.u32 %v336, 2147483648
  %v744 = vor.u32 1.1754944e-38, %v743
  %v745 = vsel %vm742, %v744, %v740
  %v746 = vmul.f32 1.0, %v745
  %v747 = vrcp.pop %v337
  %v748 = vmul.f32 %v337, %v747
  %v749 = vsub.f32 1.0, %v748
  %v750 = vmul.f32 %v747, %v749
  %v751 = vadd.f32 %v747, %v750
  %vm752 = vweird.f32 %v337
  %vm753 = vweird.f32 %v747
  %vm754 = vmor %vm752, %vm753
  %v755 = vsel %vm754, %v747, %v751
  %v756 = vand.u32 2147483647, %v337
  %vm757 = vcmp.eq.f32.partialorder %v756, 8.507059e+37
  %v758 = vand.u32 %v337, 2147483648
  %v759 = vor.u32 1.1754944e-38, %v758
  %v760 = vsel %vm757, %v759, %v755
  %v761 = vmul.f32 1.0, %v760
  %v762 = vrcp.pop %v338
  %v763 = vmul.f32 %v338, %v762
  %v764 = vsub.f32 1.0, %v763
  %v765 = vmul.f32 %v762, %v764
  %v766 = vadd.f32 %v762, %v765
  %vm767 = vweird.f32 %v338
  %vm768 = vweird.f32 %v762
  %vm769 = vmor %vm767, %vm768
  %v770 = vsel %vm769, %v762, %v766
  %v771 = vand.u32 2147483647, %v338
  %vm772 = vcmp.eq.f32.partialorder %v771, 8.507059e+37
  %v773 = vand.u32 %v338, 2147483648
  %v774 = vor.u32 1.1754944e-38, %v773
  %v775 = vsel %vm772, %v774, %v770
  %v776 = vmul.f32 1.0, %v775
  %v777 = vrcp.pop %v339
  %v778 = vmul.f32 %v339, %v777
  %v779 = vsub.f32 1.0, %v778
  %v780 = vmul.f32 %v777, %v779
  %v781 = vadd.f32 %v777, %v780
  %vm782 = vweird.f32 %v339
  %vm783 = vweird.f32 %v777
  %vm784 = vmor %vm782, %vm783
  %v785 = vsel %vm784, %v777, %v781
  %v786 = vand.u32 2147483647, %v339
  %vm787 = vcmp.eq.f32.partialorder %v786, 8.507059e+37
  %v788 = vand.u32 %v339, 2147483648
  %v789 = vor.u32 1.1754944e-38, %v788
  %v790 = vsel %vm787, %v789, %v785
  %v791 = vmul.f32 1.0, %v790
  %v792 = vrcp.pop %v340
  %v793 = vmul.f32 %v340, %v792
  %v794 = vsub.f32 1.0, %v793
  %v795 = vmul.f32 %v792, %v794
  %v796 = vadd.f32 %v792, %v795
  %vm797 = vweird.f32 %v340
  %vm798 = vweird.f32 %v792
  %vm799 = vmor %vm797, %vm798
  %v800 = vsel %vm799, %v792, %v796
  %v801 = vand.u32 2147483647, %v340
  %vm802 = vcmp.eq.f32.partialorder %v801, 8.507059e+37
  %v803 = vand.u32 %v340, 2147483648
  %v804 = vor.u32 1.1754944e-38, %v803
  %v805 = vsel %vm802, %v804, %v800
  %v806 = vmul.f32 1.0, %v805
  %v807 = vrcp.pop %v341
  %v808 = vmul.f32 %v341, %v807
  %v809 = vsub.f32 1.0, %v808
  %v810 = vmul.f32 %v807, %v809
  %v811 = vadd.f32 %v807, %v810
  %vm812 = vweird.f32 %v341
  %vm813 = vweird.f32 %v807
  %vm814 = vmor %vm812, %vm813
  %v815 = vsel %vm814, %v807, %v811
  %v816 = vand.u32 2147483647, %v341
  %vm817 = vcmp.eq.f32.partialorder %v816, 8.507059e+37
  %v818 = vand.u32 %v341, 2147483648
  %v819 = vor.u32 1.1754944e-38, %v818
  %v820 = vsel %vm817, %v819, %v815
  %v821 = vmul.f32 1.0, %v820
  %v822 = vmul.f32 %v182, %v356
  %v823 = vmul.f32 %v183, %v371
  %v824 = vmul.f32 %v184, %v386
  %v825 = vmul.f32 %v185, %v401
  %v826 = vmul.f32 %v186, %v416
  %v827 = vmul.f32 %v187, %v431
  %v828 = vmul.f32 %v188, %v446
  %v829 = vmul.f32 %v189, %v461
  %v830 = vmul.f32 %v190, %v476
  %v831 = vmul.f32 %v191, %v491
  %v832 = vmul.f32 %v192, %v506
  %v833 = vmul.f32 %v193, %v521
  %v834 = vmul.f32 %v194, %v536
  %v835 = vmul.f32 %v195, %v551
  %v836 = vmul.f32 %v196, %v566
  %v837 = vmul.f32 %v197, %v581
  %v838 = vmul.f32 %v198, %v596
  %v839 = vmul.f32 %v199, %v611
  %v840 = vmul.f32 %v200, %v626
  %v841 = vmul.f32 %v201, %v641
  %v842 = vmul.f32 %v202, %v656
  %v843 = vmul.f32 %v203, %v671
  %v844 = vmul.f32 %v204, %v686
  %v845 = vmul.f32 %v205, %v701
  %v846 = vmul.f32 %v206, %v716
  %v847 = vmul.f32 %v207, %v731
  %v848 = vmul.f32 %v208, %v746
  %v849 = vmul.f32 %v209, %v761
  %v850 = vmul.f32 %v210, %v776
  %v851 = vmul.f32 %v211, %v791
  %v852 = vmul.f32 %v212, %v806
  %v853 = vmul.f32 %v213, %v821
  %v854 = vld [vmem:[%s1] sm:$0x3]
  %v855 = vld [vmem:[%s2] sm:$0x1]
  %v856 = vunpack.c.l.bf16 %v855
  %858 = vset.pattern.permute.xlu0 0
  %859 = vperm.xlu0 %858, %v854
  %v860 = vpop.permute.xlu0 %859
  %v862 = vperm.slane %v856, 0
  %v863 = vmul.f32 %v860, %v862
  %v864 = vld [vmem:[%s3] sm:$0x1]
  %v865 = vunpack.c.l.bf16 %v864
  %v866 = vperm.slane %v865, 0
  %v867 = vadd.f32 %v863, %v866
  %v868 = vxor.u32 %v867, 2147483648
  %v869 = vmul.f32 %v868, 1.442695
  %v870 = vpow.pop %v869
  %v871 = vadd.f32 %v870, 1.0
  %v872 = vrcp.pop %v871
  %v873 = vmul.f32 %v871, %v872
  %v874 = vsub.f32 1.0, %v873
  %v875 = vmul.f32 %v872, %v874
  %v876 = vadd.f32 %v872, %v875
  %vm877 = vweird.f32 %v871
  %vm878 = vweird.f32 %v872
  %vm879 = vmor %vm877, %vm878
  %v880 = vsel %vm879, %v872, %v876
  %v881 = vand.u32 2147483647, %v871
  %vm882 = vcmp.eq.f32.partialorder %v881, 8.507059e+37
  %v883 = vand.u32 %v871, 2147483648
  %v884 = vor.u32 1.1754944e-38, %v883
  %v885 = vsel %vm882, %v884, %v880
  %v886 = vmul.f32 1.0, %v885
  %v887 = vmul.f32 %v867, %v886
  %v888 = vpack.c.bf16 %v823, %v822
  %v889 = vpack.c.bf16 %v825, %v824
  %v890 = vpack.c.bf16 %v827, %v826
  %v891 = vpack.c.bf16 %v829, %v828
  %v892 = vpack.c.bf16 %v831, %v830
  %v893 = vpack.c.bf16 %v833, %v832
  %v894 = vpack.c.bf16 %v835, %v834
  %v895 = vpack.c.bf16 %v837, %v836
  %v896 = vpack.c.bf16 %v839, %v838
  %v897 = vpack.c.bf16 %v841, %v840
  %v898 = vpack.c.bf16 %v843, %v842
  %v899 = vpack.c.bf16 %v845, %v844
  %v900 = vpack.c.bf16 %v847, %v846
  %v901 = vpack.c.bf16 %v849, %v848
  %v902 = vpack.c.bf16 %v851, %v850
  %v903 = vpack.c.bf16 %v853, %v852
  %v904 = vld [vmem:[%s4] sm:$0xf]
  %v905 = vld [vmem:[%s4 + $0x4] sm:$0xf]
  %v906 = vld [vmem:[%s4 + $0x8] sm:$0xf]
  %v907 = vld [vmem:[%s4 + $0xc] sm:$0xf]
  %v908 = vld [vmem:[%s4 + $0x10] sm:$0xf]
  %v909 = vld [vmem:[%s4 + $0x14] sm:$0xf]
  %v910 = vld [vmem:[%s4 + $0x18] sm:$0xf]
  %v911 = vld [vmem:[%s4 + $0x1c] sm:$0xf]
  %v912 = vld [vmem:[%s4 + $0x20] sm:$0xf]
  %v913 = vld [vmem:[%s4 + $0x24] sm:$0xf]
  %v914 = vld [vmem:[%s4 + $0x28] sm:$0xf]
  %v915 = vld [vmem:[%s4 + $0x2c] sm:$0xf]
  %v916 = vld [vmem:[%s4 + $0x30] sm:$0xf]
  %v917 = vld [vmem:[%s4 + $0x34] sm:$0xf]
  %v918 = vld [vmem:[%s4 + $0x38] sm:$0xf]
  %v919 = vld [vmem:[%s4 + $0x3c] sm:$0xf]
  %v920 = vpack.c.bf16 %v887, %v887
  %v921 = vld [vmem:[%s5] sm:$0xf]
  %v922 = vld [vmem:[%s5 + $0x4] sm:$0xf]
  %v923 = vld [vmem:[%s5 + $0x8] sm:$0xf]
  %v924 = vld [vmem:[%s5 + $0xc] sm:$0xf]
  %v929 = vunpack.c.l.b16 %v921
  %v930 = vunpack.c.l.b16 %v922
  %v931 = vunpack.c.l.b16 %v923
  %v932 = vunpack.c.l.b16 %v924
  %v933 = vpack.c.b16 %v930, %v929
  %v934 = vpack.c.b16 %v932, %v931
  %vm937 = vcmask 261120
  %v939 = vsel %vm937, %v920, 0
  %941 = vmatpush.bf16.msra.mxu0 0
  %942 = vmatpush.bf16.msra.mxu0 0
  %943 = vmatpush.bf16.msra.mxu0 0
  %944 = vmatpush.bf16.msra.mxu0 0
  %945 = vmatpush.bf16.msra.mxu0 0
  %946 = vmatpush.bf16.msra.mxu0 0
  %947 = vmatpush.bf16.msra.mxu0 %v934
  %948 = vmatpush.bf16.msra.mxu0 %v933
  %949 = vmatmul.bf16.gmra.mxu0 %v939
  %v950 = vpop.f32.mrf.mxu0
  %v951 = vadd.f32 0.0, %v950
  %v952 = vpop.f32.mrf.mxu0
  %953 = vdwg.mxu0
  %v970 = vunpack.c.l.b16 %v888
  %v971 = vunpack.c.h.b16 %v888
  %v972 = vunpack.c.l.b16 %v889
  %v973 = vunpack.c.h.b16 %v889
  %v974 = vunpack.c.l.b16 %v890
  %v975 = vunpack.c.h.b16 %v890
  %v976 = vunpack.c.l.b16 %v891
  %v977 = vunpack.c.h.b16 %v891
  %v978 = vunpack.c.l.b16 %v892
  %v979 = vunpack.c.h.b16 %v892
  %v980 = vunpack.c.l.b16 %v893
  %v981 = vunpack.c.h.b16 %v893
  %v982 = vunpack.c.l.b16 %v894
  %v983 = vunpack.c.h.b16 %v894
  %v984 = vunpack.c.l.b16 %v895
  %v985 = vunpack.c.h.b16 %v895
  %v986 = vunpack.c.l.b16 %v896
  %v987 = vunpack.c.h.b16 %v896
  %v988 = vunpack.c.l.b16 %v897
  %v989 = vunpack.c.h.b16 %v897
  %v990 = vunpack.c.l.b16 %v898
  %v991 = vunpack.c.h.b16 %v898
  %v992 = vunpack.c.l.b16 %v899
  %v993 = vunpack.c.h.b16 %v899
  %v994 = vunpack.c.l.b16 %v900
  %v995 = vunpack.c.h.b16 %v900
  %v996 = vunpack.c.l.b16 %v901
  %v997 = vunpack.c.h.b16 %v901
  %v998 = vunpack.c.l.b16 %v902
  %v999 = vunpack.c.h.b16 %v902
  %v1000 = vunpack.c.l.b16 %v903
  %v1001 = vunpack.c.h.b16 %v903
  %v1002 = vlaneseq
  %v1003 = vand.u32 %v1002, 127
  %v1004 = vperm.slane %v970, %v1003
  %v1005 = vadd.s32 %v1003, 4294967288
  %v1006 = vperm.slane %v971, %v1005
  %vm1007 = vcmask 130112
  %v1008 = vsel %vm1007, %v1006, %v1004
  %v1009 = vadd.s32 %v1003, 4294967280
  %v1010 = vperm.slane %v972, %v1009
  %vm1011 = vcmask 195712
  %v1012 = vsel %vm1011, %v1010, %v1008
  %v1013 = vadd.s32 %v1003, 4294967272
  %v1014 = vperm.slane %v973, %v1013
  %vm1015 = vcmask 261312
  %v1016 = vsel %vm1015, %v1014, %v1012
  %v1017 = vadd.s32 %v1003, 4294967264
  %v1018 = vperm.slane %v974, %v1017
  %vm1019 = vcmask 326912
  %v1020 = vsel %vm1019, %v1018, %v1016
  %v1021 = vadd.s32 %v1003, 4294967256
  %v1022 = vperm.slane %v975, %v1021
  %vm1023 = vcmask 392512
  %v1024 = vsel %vm1023, %v1022, %v1020
  %v1025 = vadd.s32 %v1003, 4294967248
  %v1026 = vperm.slane %v976, %v1025
  %vm1027 = vcmask 458112
  %v1028 = vsel %vm1027, %v1026, %v1024
  %v1029 = vadd.s32 %v1003, 4294967240
  %v1030 = vperm.slane %v977, %v1029
  %vm1031 = vcmask 523712
  %v1032 = vsel %vm1031, %v1030, %v1028
  %v1033 = vadd.s32 %v1003, 4294967232
  %v1034 = vperm.slane %v978, %v1033
  %vm1035 = vcmask 589312
  %v1036 = vsel %vm1035, %v1034, %v1032
  %v1037 = vadd.s32 %v1003, 4294967224
  %v1038 = vperm.slane %v979, %v1037
  %vm1039 = vcmask 654912
  %v1040 = vsel %vm1039, %v1038, %v1036
  %v1041 = vadd.s32 %v1003, 4294967216
  %v1042 = vperm.slane %v980, %v1041
  %vm1043 = vcmask 720512
  %v1044 = vsel %vm1043, %v1042, %v1040
  %v1045 = vadd.s32 %v1003, 4294967208
  %v1046 = vperm.slane %v981, %v1045
  %vm1047 = vcmask 786112
  %v1048 = vsel %vm1047, %v1046, %v1044
  %v1049 = vadd.s32 %v1003, 4294967200
  %v1050 = vperm.slane %v982, %v1049
  %vm1051 = vcmask 851712
  %v1052 = vsel %vm1051, %v1050, %v1048
  %v1053 = vadd.s32 %v1003, 4294967192
  %v1054 = vperm.slane %v983, %v1053
  %vm1055 = vcmask 917312
  %v1056 = vsel %vm1055, %v1054, %v1052
  %v1057 = vadd.s32 %v1003, 4294967184
  %v1058 = vperm.slane %v984, %v1057
  %vm1059 = vcmask 982912
  %v1060 = vsel %vm1059, %v1058, %v1056
  %v1061 = vadd.s32 %v1003, 4294967176
  %v1062 = vperm.slane %v985, %v1061
  %vm1063 = vcmask 1048512
  %v1064 = vsel %vm1063, %v1062, %v1060
  %v1065 = vperm.slane %v986, %v1003
  %v1066 = vperm.slane %v987, %v1005
  %v1067 = vsel %vm1007, %v1066, %v1065
  %v1068 = vperm.slane %v988, %v1009
  %v1069 = vsel %vm1011, %v1068, %v1067
  %v1070 = vperm.slane %v989, %v1013
  %v1071 = vsel %vm1015, %v1070, %v1069
  %v1072 = vperm.slane %v990, %v1017
  %v1073 = vsel %vm1019, %v1072, %v1071
  %v1074 = vperm.slane %v991, %v1021
  %v1075 = vsel %vm1023, %v1074, %v1073
  %v1076 = vperm.slane %v992, %v1025
  %v1077 = vsel %vm1027, %v1076, %v1075
  %v1078 = vperm.slane %v993, %v1029
  %v1079 = vsel %vm1031, %v1078, %v1077
  %v1080 = vperm.slane %v994, %v1033
  %v1081 = vsel %vm1035, %v1080, %v1079
  %v1082 = vperm.slane %v995, %v1037
  %v1083 = vsel %vm1039, %v1082, %v1081
  %v1084 = vperm.slane %v996, %v1041
  %v1085 = vsel %vm1043, %v1084, %v1083
  %v1086 = vperm.slane %v997, %v1045
  %v1087 = vsel %vm1047, %v1086, %v1085
  %v1088 = vperm.slane %v998, %v1049
  %v1089 = vsel %vm1051, %v1088, %v1087
  %v1090 = vperm.slane %v999, %v1053
  %v1091 = vsel %vm1055, %v1090, %v1089
  %v1092 = vperm.slane %v1000, %v1057
  %v1093 = vsel %vm1059, %v1092, %v1091
  %v1094 = vperm.slane %v1001, %v1061
  %v1095 = vsel %vm1063, %v1094, %v1093
  %vm1096 = vcmask 1041409
  %v1097 = vsel %vm1096, %v1095, %v1064
  %v1098 = vpack.c.b16 %v1097, %v1097
  %v1116 = vunpack.c.l.b16 %v904
  %v1117 = vunpack.c.l.b16 %v905
  %v1118 = vunpack.c.l.b16 %v906
  %v1119 = vunpack.c.l.b16 %v907
  %v1120 = vunpack.c.l.b16 %v908
  %v1121 = vunpack.c.l.b16 %v909
  %v1122 = vunpack.c.l.b16 %v910
  %v1123 = vunpack.c.l.b16 %v911
  %v1124 = vunpack.c.l.b16 %v912
  %v1125 = vunpack.c.l.b16 %v913
  %v1126 = vunpack.c.l.b16 %v914
  %v1127 = vunpack.c.l.b16 %v915
  %v1128 = vunpack.c.l.b16 %v916
  %v1129 = vunpack.c.l.b16 %v917
  %v1130 = vunpack.c.l.b16 %v918
  %v1131 = vunpack.c.l.b16 %v919
  %v1132 = vpack.c.b16 %v1117, %v1116
  %v1133 = vpack.c.b16 %v1119, %v1118
  %v1134 = vpack.c.b16 %v1121, %v1120
  %v1135 = vpack.c.b16 %v1123, %v1122
  %v1136 = vpack.c.b16 %v1125, %v1124
  %v1137 = vpack.c.b16 %v1127, %v1126
  %v1138 = vpack.c.b16 %v1129, %v1128
  %v1139 = vpack.c.b16 %v1131, %v1130
  %1148 = vmatpush.bf16.msra.mxu0 %v1139
  %1149 = vmatpush.bf16.msra.mxu0 %v1138
  %1150 = vmatpush.bf16.msra.mxu0 %v1137
  %1151 = vmatpush.bf16.msra.mxu0 %v1136
  %1152 = vmatpush.bf16.msra.mxu0 %v1135
  %1153 = vmatpush.bf16.msra.mxu0 %v1134
  %1154 = vmatpush.bf16.msra.mxu0 %v1133
  %1155 = vmatpush.bf16.msra.mxu0 %v1132
  %1156 = vmatmul.bf16.gmra.mxu0 %v1098
  %v1157 = vpop.f32.mrf.mxu0
  %v1158 = vadd.f32 %v951, %v1157
  %v1159 = vpop.f32.mrf.mxu0
  %1160 = vdwg.mxu0
  %v1161 = vld [vmem:[%s6] sm:$0x1]
  %v1162 = vunpack.c.l.bf16 %v1161
  %v1163 = vperm.slane %v1162, 0
  %v1164 = vadd.f32 %v1158, %v1163
  %v1165 = vxor.u32 %v1164, 2147483648
  %v1166 = vmul.f32 %v1165, 1.442695
  %v1167 = vpow.pop %v1166
  %v1168 = vadd.f32 %v1167, 1.0
  %v1169 = vrcp.pop %v1168
  %v1170 = vmul.f32 %v1168, %v1169
  %v1171 = vsub.f32 1.0, %v1170
  %v1172 = vmul.f32 %v1169, %v1171
  %v1173 = vadd.f32 %v1169, %v1172
  %vm1174 = vweird.f32 %v1168
  %vm1175 = vweird.f32 %v1169
  %vm1176 = vmor %vm1174, %vm1175
  %v1177 = vsel %vm1176, %v1169, %v1173
  %v1178 = vand.u32 2147483647, %v1168
  %vm1179 = vcmp.eq.f32.partialorder %v1178, 8.507059e+37
  %v1180 = vand.u32 %v1168, 2147483648
  %v1181 = vor.u32 1.1754944e-38, %v1180
  %v1182 = vsel %vm1179, %v1181, %v1177
  %v1183 = vmul.f32 1.0, %v1182
  %v1184 = vmul.f32 %v1164, %v1183
  %v1185 = vpack.c.bf16 %v1184, %v1184
  %v1186 = vld [vmem:[%s7] sm:$0xf]
  %v1187 = vld [vmem:[%s7 + $0x4] sm:$0xf]
  %v1188 = vld [vmem:[%s7 + $0x8] sm:$0xf]
  %v1189 = vld [vmem:[%s7 + $0xc] sm:$0xf]
  %v1190 = vld [vmem:[%s7 + $0x10] sm:$0xf]
  %v1191 = vld [vmem:[%s7 + $0x14] sm:$0xf]
  %v1192 = vld [vmem:[%s7 + $0x18] sm:$0xf]
  %v1193 = vld [vmem:[%s7 + $0x1c] sm:$0xf]
  %v1194 = vld [vmem:[%s8] sm:$0x1]
  %v1195 = vunpack.c.l.bf16 %v1194
  %v1196 = vperm.slane %v1195, 0
  %v1205 = vunpack.c.l.b16 %v1186
  %v1206 = vunpack.c.l.b16 %v1187
  %v1207 = vunpack.c.l.b16 %v1188
  %v1208 = vunpack.c.l.b16 %v1189
  %v1209 = vunpack.c.l.b16 %v1190
  %v1210 = vunpack.c.l.b16 %v1191
  %v1211 = vunpack.c.l.b16 %v1192
  %v1212 = vunpack.c.l.b16 %v1193
  %v1213 = vpack.c.b16 %v1206, %v1205
  %v1214 = vpack.c.b16 %v1208, %v1207
  %v1215 = vpack.c.b16 %v1210, %v1209
  %v1216 = vpack.c.b16 %v1212, %v1211
  %v1222 = vsel %vm85, %v1185, 0
  %1224 = vmatpush.bf16.msra.mxu0 0
  %1225 = vmatpush.bf16.msra.mxu0 0
  %1226 = vmatpush.bf16.msra.mxu0 0
  %1227 = vmatpush.bf16.msra.mxu0 0
  %1228 = vmatpush.bf16.msra.mxu0 %v1216
  %1229 = vmatpush.bf16.msra.mxu0 %v1215
  %1230 = vmatpush.bf16.msra.mxu0 %v1214
  %1231 = vmatpush.bf16.msra.mxu0 %v1213
  %1232 = vmatmul.bf16.gmra.mxu0 %v1222
  %v1233 = vpop.f32.mrf.mxu0
  %v1234 = vadd.f32 %v1196, %v1233
  %v1235 = vpop.f32.mrf.mxu0
  %1236 = vdwg.mxu0
  %v1237 = vxor.u32 %v1234, 2147483648
  %v1238 = vmul.f32 %v1237, 1.442695
  %v1239 = vpow.pop %v1238
  %v1240 = vadd.f32 %v1239, 1.0
  %v1241 = vrcp.pop %v1240
  %v1242 = vmul.f32 %v1240, %v1241
  %v1243 = vsub.f32 1.0, %v1242
  %v1244 = vmul.f32 %v1241, %v1243
  %v1245 = vadd.f32 %v1241, %v1244
  %vm1246 = vweird.f32 %v1240
  %vm1247 = vweird.f32 %v1241
  %vm1248 = vmor %vm1246, %vm1247
  %v1249 = vsel %vm1248, %v1241, %v1245
  %v1250 = vand.u32 2147483647, %v1240
  %vm1251 = vcmp.eq.f32.partialorder %v1250, 8.507059e+37
  %v1252 = vand.u32 %v1240, 2147483648
  %v1253 = vor.u32 1.1754944e-38, %v1252
  %v1254 = vsel %vm1251, %v1253, %v1249
  %v1255 = vmul.f32 1.0, %v1254
  %v1256 = vmul.f32 %v1234, %v1255
  %v1257 = vpack.c.bf16 %v1256, %v1256
  %v1258 = vld [vmem:[%s9] sm:$0xf]
  %v1259 = vld [vmem:[%s9 + $0x4] sm:$0xf]
  %v1260 = vld [vmem:[%s9 + $0x8] sm:$0xf]
  %v1261 = vld [vmem:[%s9 + $0xc] sm:$0xf]
  %v1262 = vld [vmem:[%s9 + $0x10] sm:$0xf]
  %v1263 = vld [vmem:[%s9 + $0x14] sm:$0xf]
  %v1264 = vld [vmem:[%s9 + $0x18] sm:$0xf]
  %v1265 = vld [vmem:[%s9 + $0x1c] sm:$0xf]
  %v1266 = vld [vmem:[%s10] sm:$0x1]
  %v1267 = vunpack.c.l.bf16 %v1266
  %v1268 = vperm.slane %v1267, 0
  %v1277 = vunpack.c.l.b16 %v1258
  %v1278 = vunpack.c.l.b16 %v1259
  %v1279 = vunpack.c.l.b16 %v1260
  %v1280 = vunpack.c.l.b16 %v1261
  %v1281 = vunpack.c.l.b16 %v1262
  %v1282 = vunpack.c.l.b16 %v1263
  %v1283 = vunpack.c.l.b16 %v1264
  %v1284 = vunpack.c.l.b16 %v1265
  %v1285 = vpack.c.b16 %v1278, %v1277
  %v1286 = vpack.c.b16 %v1280, %v1279
  %v1287 = vpack.c.b16 %v1282, %v1281
  %v1288 = vpack.c.b16 %v1284, %v1283
  %v1294 = vsel %vm85, %v1257, 0
  %1296 = vmatpush.bf16.msra.mxu0 0
  %1297 = vmatpush.bf16.msra.mxu0 0
  %1298 = vmatpush.bf16.msra.mxu0 0
  %1299 = vmatpush.bf16.msra.mxu0 0
  %1300 = vmatpush.bf16.msra.mxu0 %v1288
  %1301 = vmatpush.bf16.msra.mxu0 %v1287
  %1302 = vmatpush.bf16.msra.mxu0 %v1286
  %1303 = vmatpush.bf16.msra.mxu0 %v1285
  %1304 = vmatmul.bf16.gmra.mxu0 %v1294
  %v1305 = vpop.f32.mrf.mxu0
  %v1306 = vadd.f32 %v1268, %v1305
  %v1307 = vpop.f32.mrf.mxu0
  %1308 = vdwg.mxu0
  %v1309 = vxor.u32 %v1306, 2147483648
  %v1310 = vmul.f32 %v1309, 1.442695
  %v1311 = vpow.pop %v1310
  %v1312 = vadd.f32 %v1311, 1.0
  %v1313 = vrcp.pop %v1312
  %v1314 = vmul.f32 %v1312, %v1313
  %v1315 = vsub.f32 1.0, %v1314
  %v1316 = vmul.f32 %v1313, %v1315
  %v1317 = vadd.f32 %v1313, %v1316
  %vm1318 = vweird.f32 %v1312
  %vm1319 = vweird.f32 %v1313
  %vm1320 = vmor %vm1318, %vm1319
  %v1321 = vsel %vm1320, %v1313, %v1317
  %v1322 = vand.u32 2147483647, %v1312
  %vm1323 = vcmp.eq.f32.partialorder %v1322, 8.507059e+37
  %v1324 = vand.u32 %v1312, 2147483648
  %v1325 = vor.u32 1.1754944e-38, %v1324
  %v1326 = vsel %vm1323, %v1325, %v1321
  %v1327 = vmul.f32 1.0, %v1326
  %v1328 = vmul.f32 %v1306, %v1327
  %v1329 = vpack.c.bf16 %v1328, %v1328
  %v1330 = vld [vmem:[%s11] sm:$0xf]
  %v1331 = vld [vmem:[%s11 + $0x4] sm:$0xf]
  %v1332 = vld [vmem:[%s11 + $0x8] sm:$0xf]
  %v1333 = vld [vmem:[%s11 + $0xc] sm:$0xf]
  %v1334 = vld [vmem:[%s12] sm:$0x1]
  %v1335 = vunpack.c.l.bf16 %v1334
  %v1336 = vperm.slane %v1335, 0
  %v1341 = vunpack.c.l.b16 %v1330
  %v1342 = vunpack.c.l.b16 %v1331
  %v1343 = vunpack.c.l.b16 %v1332
  %v1344 = vunpack.c.l.b16 %v1333
  %v1345 = vpack.c.b16 %v1342, %v1341
  %v1346 = vpack.c.b16 %v1344, %v1343
  %v1350 = vsel %vm937, %v1329, 0
  %1352 = vmatpush.bf16.msra.mxu0 0
  %1353 = vmatpush.bf16.msra.mxu0 0
  %1354 = vmatpush.bf16.msra.mxu0 0
  %1355 = vmatpush.bf16.msra.mxu0 0
  %1356 = vmatpush.bf16.msra.mxu0 0
  %1357 = vmatpush.bf16.msra.mxu0 0
  %1358 = vmatpush.bf16.msra.mxu0 %v1346
  %1359 = vmatpush.bf16.msra.mxu0 %v1345
  %1360 = vmatmul.bf16.gmra.mxu0 %v1350
  %v1361 = vpop.f32.mrf.mxu0
  %v1362 = vadd.f32 %v1336, %v1361
  %v1363 = vpop.f32.mrf.mxu0
  %1364 = vdwg.mxu0
  %v1365 = vxor.u32 %v1362, 2147483648
  %v1366 = vmul.f32 %v1365, 1.442695
  %v1367 = vpow.pop %v1366
  %v1368 = vadd.f32 %v1367, 1.0
  %v1369 = vrcp.pop %v1368
  %v1370 = vmul.f32 %v1368, %v1369
  %v1371 = vsub.f32 1.0, %v1370
  %v1372 = vmul.f32 %v1369, %v1371
  %v1373 = vadd.f32 %v1369, %v1372
  %vm1374 = vweird.f32 %v1368
  %vm1375 = vweird.f32 %v1369
  %vm1376 = vmor %vm1374, %vm1375
  %v1377 = vsel %vm1376, %v1369, %v1373
  %v1378 = vand.u32 2147483647, %v1368
  %vm1379 = vcmp.eq.f32.partialorder %v1378, 8.507059e+37
  %v1380 = vand.u32 %v1368, 2147483648
  %v1381 = vor.u32 1.1754944e-38, %v1380
  %v1382 = vsel %vm1379, %v1381, %v1377
  %v1383 = vmul.f32 1.0, %v1382
  %v1384 = vmul.f32 %v1362, %v1383
  %v1385 = vld [vmem:[%s13] sm:$0x1]
  %v1386 = vunpack.c.l.bf16 %v1385
  %v1387 = vperm.slane %v1386, 0
  %v1388 = vmul.f32 %v1384, %v1387
  %vm1389 = vcmask 254976
  %v1390 = vsel %vm1389, %v1388, 0.0
  %1391 = vadd.xlane.f32.xlu0 %v1390
  %v1392 = vpop.xlane.xlu0 %1391
  %v1393 = vld [vmem:[#allocation2] sm:$0x1]
  %v1394 = vunpack.c.l.bf16 %v1393
  %v1395 = vperm.slane %v1394, 0
  %v1396 = vadd.f32 %v1392, %v1395
  %vm1397 = vcmask 1024
  %1398 = vst.msk [vmem:[%s15] sm:$0x3] %vm1397, %v1396
  // Predicated region
  $region62: #{tpu_custom_call.1} parent=0 // pred_check
    _
  $region63: #{tpu_custom_call.1} parent=0 // pred_check_branch
    %1400 = sbr.rel (0) target = $region65
  $region64: #{tpu_custom_call.1} parent=0 // pred_region
    _
  $region65: #{tpu_custom_call.1} parent=0 // pred_fallthru
    _
  // Predicated region
  $region66: #{tpu_custom_call.1} parent=0 // pred_check
    _
  $region67: #{tpu_custom_call.1} parent=0 // pred_check_branch
    %1402 = sbr.rel (0) target = $region69
  $region68: #{tpu_custom_call.1} parent=0 // pred_region
    _
  $region69: #{tpu_custom_call.1} parent=0 // pred_fallthru
    _

</llo_original>
